<compile_context>
chip_gen: v7x
topology: tpu7x:2x2x1
jax: 0.10.0
libtpu: 0.0.40
codegen_flags: <defaults>
</compile_context>

<pallas_src>
import jax
import jax.numpy as jnp
from jax.experimental import pallas as pl
from jax.experimental.pallas import tpu as pltpu

LEAKY_SLOPE = 0.01              # nn.LeakyReLU() default
BN_EPS = 1e-5                   # nn.BatchNorm2d default
LANE = 128
SUBLANE = 8
MAX_TILE_M = 1024               # rows per grid step (512-2048 sweet spot)
VMEM_LIMIT = 48 * 1024 * 1024   # below physical VMEM on v5e/v6e/v7x


def _round_up(x, m):
    return (x + m - 1) // m * m


# ---------------------------------------------------------------------------
# Pallas kernels
# ---------------------------------------------------------------------------
def _matmul_stats_kernel(p_ref, w_ref, y_ref, sum_ref, sq_ref):
    """Pass 1: y = P @ W for one M tile; accumulate per-channel sum / sumsq."""
    i = pl.program_id(0)

    @pl.when(i == 0)
    def _():
        sum_ref[...] = jnp.zeros_like(sum_ref)
        sq_ref[...] = jnp.zeros_like(sq_ref)

    y = jnp.dot(p_ref[...], w_ref[...], preferred_element_type=jnp.float32)
    y_ref[...] = y

    # VPU-only partial accumulation: fold TILE_M rows into an (8, Cp) slab;
    # the single cross-sublane reduce happens once, outside the kernel.
    tm, cp = y_ref.shape
    yr = y.reshape(tm // SUBLANE, SUBLANE, cp)
    sum_ref[...] += jnp.sum(yr, axis=0)
    sq_ref[...] += jnp.sum(yr * yr, axis=0)


def _bn_lrelu_kernel(y_ref, scale_ref, shift_ref, o_ref):
    """Pass 2: per-element affine BN + LeakyReLU."""
    z = y_ref[...] * scale_ref[...] + shift_ref[...]
    o_ref[...] = jnp.where(z >= 0, z, LEAKY_SLOPE * z)


def _bn_lrelu_res_kernel(y_ref, scale_ref, shift_ref, r_ref, o_ref):
    """Pass 2 with fused residual add."""
    z = y_ref[...] * scale_ref[...] + shift_ref[...]
    o_ref[...] = r_ref[...] + jnp.where(z >= 0, z, LEAKY_SLOPE * z)


# ---------------------------------------------------------------------------
# Plain-JAX glue: im2col patch extraction (layout plumbing)
# ---------------------------------------------------------------------------
def _im2col(x_nhwc, kernel, stride, padding):
    N, H, W, C = x_nhwc.shape
    xp = jnp.pad(x_nhwc, ((0, 0), (padding, padding), (padding, padding), (0, 0)))
    Hout = (H + 2 * padding - kernel) // stride + 1
    Wout = (W + 2 * padding - kernel) // stride + 1
    cols = []
    for dy in range(kernel):
        for dx in range(kernel):
            patch = jax.lax.slice(
                xp,
                (0, dy, dx, 0),
                (N, dy + stride * (Hout - 1) + 1, dx + stride * (Wout - 1) + 1, C),
                (1, stride, stride, 1))
            cols.append(patch.reshape(N * Hout * Wout, C))
    return jnp.concatenate(cols, axis=1), (N, Hout, Wout)


# ---------------------------------------------------------------------------
# One Conv2d(3x3, pad=1) + BatchNorm2d + LeakyReLU (+ residual) stage
# ---------------------------------------------------------------------------
def conv_bn_lrelu(x_nhwc, w_oihw, gamma, beta, stride, residual=None):
    cout, cin, kh, kw = w_oihw.shape
    patches, (N, Hout, Wout) = _im2col(x_nhwc, kh, stride, padding=1)
    M, K = patches.shape

    # Lane-dense padding of contraction and channel dims, sublane-aligned M.
    Kp = _round_up(K, LANE)
    Cp = _round_up(cout, LANE)
    tile_m = min(MAX_TILE_M, _round_up(M, SUBLANE))
    M_pad = _round_up(M, tile_m)
    grid_m = M_pad // tile_m

    patches = jnp.pad(patches, ((0, M_pad - M), (0, Kp - K)))
    # PyTorch OIHW -> (kh, kw, Cin, Cout) -> (K, Cout), matching im2col order.
    w_flat = jnp.transpose(w_oihw, (2, 3, 1, 0)).reshape(K, cout)
    w_flat = jnp.pad(w_flat, ((0, Kp - K), (0, Cp - cout)))
    gamma_p = jnp.pad(gamma, (0, Cp - cout)).reshape(1, Cp)
    beta_p = jnp.pad(beta, (0, Cp - cout)).reshape(1, Cp)

    # ---- pass 1: tiled matmul + per-channel stat accumulation -------------
    y, sum8, sq8 = pl.pallas_call(
        _matmul_stats_kernel,
        out_shape=(jax.ShapeDtypeStruct((M_pad, Cp), jnp.float32),
                   jax.ShapeDtypeStruct((SUBLANE, Cp), jnp.float32),
                   jax.ShapeDtypeStruct((SUBLANE, Cp), jnp.float32)),
        grid_spec=pltpu.PrefetchScalarGridSpec(
            num_scalar_prefetch=0,
            grid=(grid_m,),
            in_specs=[
                pl.BlockSpec((tile_m, Kp), lambda i: (i, 0)),
                pl.BlockSpec((Kp, Cp), lambda i: (0, 0)),       # weights resident
            ],
            out_specs=(
                pl.BlockSpec((tile_m, Cp), lambda i: (i, 0)),
                pl.BlockSpec((SUBLANE, Cp), lambda i: (0, 0)),  # accumulators
                pl.BlockSpec((SUBLANE, Cp), lambda i: (0, 0)),
            )),
        compiler_params=pltpu.CompilerParams(
            dimension_semantics=("arbitrary",),
            vmem_limit_bytes=VMEM_LIMIT),
    )(patches, w_flat)

    # ---- finalize BN (tiny per-channel math, plain JAX) --------------------
    count = jnp.float32(M)                       # padded rows contribute 0
    mean = jnp.sum(sum8, axis=0, keepdims=True) / count
    var = jnp.sum(sq8, axis=0, keepdims=True) / count - mean * mean
    var = jnp.maximum(var, 0.0)                  # guard E[x^2]-E[x]^2 rounding
    scale = gamma_p * jax.lax.rsqrt(var + BN_EPS)
    shift = beta_p - mean * scale

    # ---- pass 2: affine BN + LeakyReLU (+ fused residual) ------------------
    args = [y, scale, shift]
    in_specs = [
        pl.BlockSpec((tile_m, Cp), lambda i: (i, 0)),
        pl.BlockSpec((1, Cp), lambda i: (0, 0)),
        pl.BlockSpec((1, Cp), lambda i: (0, 0)),
    ]
    kern = _bn_lrelu_kernel
    if residual is not None:
        r = residual.reshape(M, cout)
        r = jnp.pad(r, ((0, M_pad - M), (0, Cp - cout)))
        args.append(r)
        in_specs.append(pl.BlockSpec((tile_m, Cp), lambda i: (i, 0)))
        kern = _bn_lrelu_res_kernel

    out = pl.pallas_call(
        kern,
        out_shape=jax.ShapeDtypeStruct((M_pad, Cp), jnp.float32),
        grid_spec=pltpu.PrefetchScalarGridSpec(
            num_scalar_prefetch=0,
            grid=(grid_m,),
            in_specs=in_specs,
            out_specs=pl.BlockSpec((tile_m, Cp), lambda i: (i, 0))),
        compiler_params=pltpu.CompilerParams(
            dimension_semantics=("parallel",),
            vmem_limit_bytes=VMEM_LIMIT),
    )(*args)

    return out[:M, :cout].reshape(N, Hout, Wout, cout)


# ---------------------------------------------------------------------------
# ResBlock forward (matches the PyTorch module structure)
# ---------------------------------------------------------------------------
def res_block_forward(x_nchw, res_params, down_params):
    x = jnp.transpose(x_nchw, (0, 2, 3, 1))      # NCHW -> NHWC
    # ResidualConnection: the SAME resLayer applied twice, then residual add.
    # (conv bias b is accepted but not used: training-mode BN cancels it.)
    for (w, b, g, be) in res_params:
        x1 = conv_bn_lrelu(x, w, g, be, stride=1)
        x = conv_bn_lrelu(x1, w, g, be, stride=1, residual=x)
    # DownSample: conv stride 2 + BN + LeakyReLU
    w, b, g, be = down_params
    x = conv_bn_lrelu(x, w, g, be, stride=2)
    return jnp.transpose(x, (0, 3, 1, 2))        # NHWC -> NCHW


# ---------------------------------------------------------------------------
# Pure-JAX reference (for correctness check; includes the conv bias)
# ---------------------------------------------------------------------------
def _ref_stage(x, w, b, gamma, beta, stride):
    y = jax.lax.conv_general_dilated(
        x, w, (stride, stride), ((1, 1), (1, 1)),
        dimension_numbers=('NCHW', 'OIHW', 'NCHW'))
    y = y + b.reshape(1, -1, 1, 1)
    mean = jnp.mean(y, axis=(0, 2, 3), keepdims=True)
    var = jnp.mean(jnp.square(y - mean), axis=(0, 2, 3), keepdims=True)
    yn = (y - mean) / jnp.sqrt(var + BN_EPS)
    yn = yn * gamma.reshape(1, -1, 1, 1) + beta.reshape(1, -1, 1, 1)
    return jnp.where(yn >= 0, yn, LEAKY_SLOPE * yn)


def res_block_ref(x, res_params, down_params):
    for (w, b, g, be) in res_params:
        x1 = _ref_stage(x, w, b, g, be, 1)
        x2 = _ref_stage(x1, w, b, g, be, 1)
        x = x + x2
    w, b, g, be = down_params
    return _ref_stage(x, w, b, g, be, 2)


# ---------------------------------------------------------------------------
if __name__ == "__main__":
    in_dim, out_dim, depth = 4, 8, 2
    N, H, W = 2, 16, 16

    keys = jax.random.split(jax.random.PRNGKey(0), 8)
    x = jax.random.normal(keys[0], (N, in_dim, H, W), jnp.float32)

    # Deterministic synthetic parameters (shapes match the nn module __init__).
    res_params = []
    for i in range(depth):
        kw_, kb, kg, kbe = jax.random.split(keys[1 + i], 4)
        w = 0.1 * jax.random.normal(kw_, (in_dim, in_dim, 3, 3), jnp.float32)
        b = 0.1 * jax.random.normal(kb, (in_dim,), jnp.float32)
        g = 1.0 + 0.1 * jax.random.normal(kg, (in_dim,), jnp.float32)
        be = 0.1 * jax.random.normal(kbe, (in_dim,), jnp.float32)
        res_params.append((w, b, g, be))

    kw_, kb, kg, kbe = jax.random.split(keys[1 + depth], 4)
    down_params = (
        0.1 * jax.random.normal(kw_, (out_dim, in_dim, 3, 3), jnp.float32),
        0.1 * jax.random.normal(kb, (out_dim,), jnp.float32),
        1.0 + 0.1 * jax.random.normal(kg, (out_dim,), jnp.float32),
        0.1 * jax.random.normal(kbe, (out_dim,), jnp.float32),
    )

    forward = jax.jit(res_block_forward)
    out = jax.block_until_ready(forward(x, res_params, down_params))
    assert out.shape == (N, out_dim, H // 2, W // 2), out.shape

    ref = jax.block_until_ready(res_block_ref(x, res_params, down_params))
    max_err = float(jnp.max(jnp.abs(out - ref)))
    assert max_err < 2e-2, f"max abs err too large: {max_err}"

    print("KERNEL_OK")
</pallas_src>

<mosaic_0001>
module attributes {stable_mosaic.version = 11 : i64} {
  func.func @_matmul_stats_kernel(%arg0: i32, %arg1: memref<512x128xf32, #tpu.memory_space<vmem>>, %arg2: memref<128x128xf32, #tpu.memory_space<vmem>>, %arg3: memref<512x128xf32, #tpu.memory_space<vmem>>, %arg4: memref<8x128xf32, #tpu.memory_space<vmem>>, %arg5: memref<8x128xf32, #tpu.memory_space<vmem>>) attributes {dimension_semantics = [#tpu.dimension_semantics<arbitrary>], iteration_bounds = array<i64: 1>, scalar_prefetch = 0 : i64, scratch_operands = 0 : i64, tpu.core_type = #tpu.core_type<tc>, window_params = [{transform_indices = @transform_0, window_bounds = array<i64: 512, 128>}, {pipeline_mode = #tpu.pipeline_mode<synchronous>, transform_indices = @transform_1, window_bounds = array<i64: 128, 128>}, {transform_indices = @transform_2, window_bounds = array<i64: 512, 128>}, {pipeline_mode = #tpu.pipeline_mode<synchronous>, transform_indices = @transform_3, window_bounds = array<i64: 8, 128>}, {pipeline_mode = #tpu.pipeline_mode<synchronous>, transform_indices = @transform_4, window_bounds = array<i64: 8, 128>}]} {
    %c0_i32 = arith.constant 0 : i32
    %0 = arith.cmpi eq, %arg0, %c0_i32 : i32
    %1 = arith.extui %0 : i1 to i32
    %c0_i32_0 = arith.constant 0 : i32
    %2 = arith.cmpi ne, %1, %c0_i32_0 : i32
    scf.if %2 {
      %cst_16 = arith.constant 0.000000e+00 : f32
      %17 = vector.broadcast %cst_16 : f32 to vector<8x128xf32>
      %c0_17 = arith.constant 0 : index
      %c0_18 = arith.constant 0 : index
      %18 = vector.load %arg4[%c0_17, %c0_18] : memref<8x128xf32, #tpu.memory_space<vmem>>, vector<8x128xf32>
      tpu.vector_store %arg4[%c0_17, %c0_18], %17 {strides = array<i32>} : memref<8x128xf32, #tpu.memory_space<vmem>>, vector<8x128xf32>,
      %cst_19 = arith.constant 0.000000e+00 : f32
      %19 = vector.broadcast %cst_19 : f32 to vector<8x128xf32>
      %c0_20 = arith.constant 0 : index
      %c0_21 = arith.constant 0 : index
      %20 = vector.load %arg5[%c0_20, %c0_21] : memref<8x128xf32, #tpu.memory_space<vmem>>, vector<8x128xf32>
      tpu.vector_store %arg5[%c0_20, %c0_21], %19 {strides = array<i32>} : memref<8x128xf32, #tpu.memory_space<vmem>>, vector<8x128xf32>,
    } else {
    }
    %c0 = arith.constant 0 : index
    %c0_1 = arith.constant 0 : index
    %3 = vector.load %arg1[%c0, %c0_1] : memref<512x128xf32, #tpu.memory_space<vmem>>, vector<512x128xf32>
    %c0_2 = arith.constant 0 : index
    %c0_3 = arith.constant 0 : index
    %4 = vector.load %arg2[%c0_2, %c0_3] : memref<128x128xf32, #tpu.memory_space<vmem>>, vector<128x128xf32>
    %cst = arith.constant dense<0.000000e+00> : vector<512x128xf32>
    %5 = tpu.matmul %3, %4, %cst {dimension_numbers = #tpu.dot_dimension_numbers<[1], [0], [0], [1], [0, 0, 1, 1], [], []>} : vector<512x128xf32>, vector<128x128xf32>, vector<512x128xf32> -> vector<512x128xf32>
    %c0_4 = arith.constant 0 : index
    %c0_5 = arith.constant 0 : index
    %6 = vector.load %arg3[%c0_4, %c0_5] : memref<512x128xf32, #tpu.memory_space<vmem>>, vector<512x128xf32>
    tpu.vector_store %arg3[%c0_4, %c0_5], %5 {strides = array<i32>} : memref<512x128xf32, #tpu.memory_space<vmem>>, vector<512x128xf32>,
    %7 = vector.shape_cast %5 : vector<512x128xf32> to vector<64x8x128xf32>
    %c0_6 = arith.constant 0 : index
    %c0_7 = arith.constant 0 : index
    %8 = vector.load %arg4[%c0_6, %c0_7] : memref<8x128xf32, #tpu.memory_space<vmem>>, vector<8x128xf32>
    %cst_8 = arith.constant dense<0.000000e+00> : vector<8x128xf32>
    %9 = vector.multi_reduction <add>, %7, %cst_8 [0] : vector<64x8x128xf32> to vector<8x128xf32>
    %10 = arith.addf %8, %9 : vector<8x128xf32>
    %c0_9 = arith.constant 0 : index
    %c0_10 = arith.constant 0 : index
    %11 = vector.load %arg4[%c0_9, %c0_10] : memref<8x128xf32, #tpu.memory_space<vmem>>, vector<8x128xf32>
    tpu.vector_store %arg4[%c0_9, %c0_10], %10 {strides = array<i32>} : memref<8x128xf32, #tpu.memory_space<vmem>>, vector<8x128xf32>,
    %c0_11 = arith.constant 0 : index
    %c0_12 = arith.constant 0 : index
    %12 = vector.load %arg5[%c0_11, %c0_12] : memref<8x128xf32, #tpu.memory_space<vmem>>, vector<8x128xf32>
    %13 = arith.mulf %7, %7 : vector<64x8x128xf32>
    %cst_13 = arith.constant dense<0.000000e+00> : vector<8x128xf32>
    %14 = vector.multi_reduction <add>, %13, %cst_13 [0] : vector<64x8x128xf32> to vector<8x128xf32>
    %15 = arith.addf %12, %14 : vector<8x128xf32>
    %c0_14 = arith.constant 0 : index
    %c0_15 = arith.constant 0 : index
    %16 = vector.load %arg5[%c0_14, %c0_15] : memref<8x128xf32, #tpu.memory_space<vmem>>, vector<8x128xf32>
    tpu.vector_store %arg5[%c0_14, %c0_15], %15 {strides = array<i32>} : memref<8x128xf32, #tpu.memory_space<vmem>>, vector<8x128xf32>,
    return
  }
  func.func @transform_0(%arg0: i32) -> (i32, i32) {
    %c0_i32 = arith.constant 0 : i32
    %c0_i32_0 = arith.constant 0 : i32
    return %arg0, %c0_i32 : i32, i32
  }
  func.func @transform_1(%arg0: i32) -> (i32, i32) {
    %c0_i32 = arith.constant 0 : i32
    %c0_i32_0 = arith.constant 0 : i32
    %c0_i32_1 = arith.constant 0 : i32
    return %c0_i32, %c0_i32_0 : i32, i32
  }
  func.func @transform_2(%arg0: i32) -> (i32, i32) {
    %c0_i32 = arith.constant 0 : i32
    %c0_i32_0 = arith.constant 0 : i32
    return %arg0, %c0_i32 : i32, i32
  }
  func.func @transform_3(%arg0: i32) -> (i32, i32) {
    %c0_i32 = arith.constant 0 : i32
    %c0_i32_0 = arith.constant 0 : i32
    %c0_i32_1 = arith.constant 0 : i32
    return %c0_i32, %c0_i32_0 : i32, i32
  }
  func.func @transform_4(%arg0: i32) -> (i32, i32) {
    %c0_i32 = arith.constant 0 : i32
    %c0_i32_0 = arith.constant 0 : i32
    %c0_i32_1 = arith.constant 0 : i32
    return %c0_i32, %c0_i32_0 : i32, i32
  }
}

module attributes {stable_mosaic.version = 11 : i64} {
  func.func @_bn_lrelu_kernel(%arg0: i32, %arg1: memref<512x128xf32, #tpu.memory_space<vmem>>, %arg2: memref<1x128xf32, #tpu.memory_space<vmem>>, %arg3: memref<1x128xf32, #tpu.memory_space<vmem>>, %arg4: memref<512x128xf32, #tpu.memory_space<vmem>>) attributes {dimension_semantics = [#tpu.dimension_semantics<parallel>], iteration_bounds = array<i64: 1>, scalar_prefetch = 0 : i64, scratch_operands = 0 : i64, tpu.core_type = #tpu.core_type<tc>, window_params = [{transform_indices = @transform_0, window_bounds = array<i64: 512, 128>}, {pipeline_mode = #tpu.pipeline_mode<synchronous>, transform_indices = @transform_1, window_bounds = array<i64: 1, 128>}, {pipeline_mode = #tpu.pipeline_mode<synchronous>, transform_indices = @transform_2, window_bounds = array<i64: 1, 128>}, {transform_indices = @transform_3, window_bounds = array<i64: 512, 128>}]} {
    %c0 = arith.constant 0 : index
    %c0_0 = arith.constant 0 : index
    %0 = vector.load %arg1[%c0, %c0_0] : memref<512x128xf32, #tpu.memory_space<vmem>>, vector<512x128xf32>
    %c0_1 = arith.constant 0 : index
    %c0_2 = arith.constant 0 : index
    %1 = vector.load %arg2[%c0_1, %c0_2] : memref<1x128xf32, #tpu.memory_space<vmem>>, vector<1x128xf32>
    %2 = vector.broadcast %1 : vector<1x128xf32> to vector<512x128xf32>
    %3 = arith.mulf %0, %2 : vector<512x128xf32>
    %c0_3 = arith.constant 0 : index
    %c0_4 = arith.constant 0 : index
    %4 = vector.load %arg3[%c0_3, %c0_4] : memref<1x128xf32, #tpu.memory_space<vmem>>, vector<1x128xf32>
    %5 = vector.broadcast %4 : vector<1x128xf32> to vector<512x128xf32>
    %6 = arith.addf %3, %5 : vector<512x128xf32>
    %cst = arith.constant 0.000000e+00 : f32
    %7 = vector.broadcast %cst : f32 to vector<512x128xf32>
    %8 = arith.cmpf oge, %6, %7 : vector<512x128xf32>
    %cst_5 = arith.constant 0.00999999977 : f32
    %9 = vector.broadcast %cst_5 : f32 to vector<512x128xf32>
    %10 = arith.mulf %9, %6 : vector<512x128xf32>
    %11 = arith.select %8, %6, %10 : vector<512x128xi1>, vector<512x128xf32>
    %c0_6 = arith.constant 0 : index
    %c0_7 = arith.constant 0 : index
    %12 = vector.load %arg4[%c0_6, %c0_7] : memref<512x128xf32, #tpu.memory_space<vmem>>, vector<512x128xf32>
    tpu.vector_store %arg4[%c0_6, %c0_7], %11 {strides = array<i32>} : memref<512x128xf32, #tpu.memory_space<vmem>>, vector<512x128xf32>,
    return
  }
  func.func @transform_0(%arg0: i32) -> (i32, i32) {
    %c0_i32 = arith.constant 0 : i32
    %c0_i32_0 = arith.constant 0 : i32
    return %arg0, %c0_i32 : i32, i32
  }
  func.func @transform_1(%arg0: i32) -> (i32, i32) {
    %c0_i32 = arith.constant 0 : i32
    %c0_i32_0 = arith.constant 0 : i32
    %c0_i32_1 = arith.constant 0 : i32
    return %c0_i32, %c0_i32_0 : i32, i32
  }
  func.func @transform_2(%arg0: i32) -> (i32, i32) {
    %c0_i32 = arith.constant 0 : i32
    %c0_i32_0 = arith.constant 0 : i32
    %c0_i32_1 = arith.constant 0 : i32
    return %c0_i32, %c0_i32_0 : i32, i32
  }
  func.func @transform_3(%arg0: i32) -> (i32, i32) {
    %c0_i32 = arith.constant 0 : i32
    %c0_i32_0 = arith.constant 0 : i32
    return %arg0, %c0_i32 : i32, i32
  }
}

module attributes {stable_mosaic.version = 11 : i64} {
  func.func @_bn_lrelu_res_kernel(%arg0: i32, %arg1: memref<512x128xf32, #tpu.memory_space<vmem>>, %arg2: memref<1x128xf32, #tpu.memory_space<vmem>>, %arg3: memref<1x128xf32, #tpu.memory_space<vmem>>, %arg4: memref<512x128xf32, #tpu.memory_space<vmem>>, %arg5: memref<512x128xf32, #tpu.memory_space<vmem>>) attributes {dimension_semantics = [#tpu.dimension_semantics<parallel>], iteration_bounds = array<i64: 1>, scalar_prefetch = 0 : i64, scratch_operands = 0 : i64, tpu.core_type = #tpu.core_type<tc>, window_params = [{transform_indices = @transform_0, window_bounds = array<i64: 512, 128>}, {pipeline_mode = #tpu.pipeline_mode<synchronous>, transform_indices = @transform_1, window_bounds = array<i64: 1, 128>}, {pipeline_mode = #tpu.pipeline_mode<synchronous>, transform_indices = @transform_2, window_bounds = array<i64: 1, 128>}, {transform_indices = @transform_3, window_bounds = array<i64: 512, 128>}, {transform_indices = @transform_4, window_bounds = array<i64: 512, 128>}]} {
    %c0 = arith.constant 0 : index
    %c0_0 = arith.constant 0 : index
    %0 = vector.load %arg1[%c0, %c0_0] : memref<512x128xf32, #tpu.memory_space<vmem>>, vector<512x128xf32>
    %c0_1 = arith.constant 0 : index
    %c0_2 = arith.constant 0 : index
    %1 = vector.load %arg2[%c0_1, %c0_2] : memref<1x128xf32, #tpu.memory_space<vmem>>, vector<1x128xf32>
    %2 = vector.broadcast %1 : vector<1x128xf32> to vector<512x128xf32>
    %3 = arith.mulf %0, %2 : vector<512x128xf32>
    %c0_3 = arith.constant 0 : index
    %c0_4 = arith.constant 0 : index
    %4 = vector.load %arg3[%c0_3, %c0_4] : memref<1x128xf32, #tpu.memory_space<vmem>>, vector<1x128xf32>
    %5 = vector.broadcast %4 : vector<1x128xf32> to vector<512x128xf32>
    %6 = arith.addf %3, %5 : vector<512x128xf32>
    %c0_5 = arith.constant 0 : index
    %c0_6 = arith.constant 0 : index
    %7 = vector.load %arg4[%c0_5, %c0_6] : memref<512x128xf32, #tpu.memory_space<vmem>>, vector<512x128xf32>
    %cst = arith.constant 0.000000e+00 : f32
    %8 = vector.broadcast %cst : f32 to vector<512x128xf32>
    %9 = arith.cmpf oge, %6, %8 : vector<512x128xf32>
    %cst_7 = arith.constant 0.00999999977 : f32
    %10 = vector.broadcast %cst_7 : f32 to vector<512x128xf32>
    %11 = arith.mulf %10, %6 : vector<512x128xf32>
    %12 = arith.select %9, %6, %11 : vector<512x128xi1>, vector<512x128xf32>
    %13 = arith.addf %7, %12 : vector<512x128xf32>
    %c0_8 = arith.constant 0 : index
    %c0_9 = arith.constant 0 : index
    %14 = vector.load %arg5[%c0_8, %c0_9] : memref<512x128xf32, #tpu.memory_space<vmem>>, vector<512x128xf32>
    tpu.vector_store %arg5[%c0_8, %c0_9], %13 {strides = array<i32>} : memref<512x128xf32, #tpu.memory_space<vmem>>, vector<512x128xf32>,
    return
  }
  func.func @transform_0(%arg0: i32) -> (i32, i32) {
    %c0_i32 = arith.constant 0 : i32
    %c0_i32_0 = arith.constant 0 : i32
    return %arg0, %c0_i32 : i32, i32
  }
  func.func @transform_1(%arg0: i32) -> (i32, i32) {
    %c0_i32 = arith.constant 0 : i32
    %c0_i32_0 = arith.constant 0 : i32
    %c0_i32_1 = arith.constant 0 : i32
    return %c0_i32, %c0_i32_0 : i32, i32
  }
  func.func @transform_2(%arg0: i32) -> (i32, i32) {
    %c0_i32 = arith.constant 0 : i32
    %c0_i32_0 = arith.constant 0 : i32
    %c0_i32_1 = arith.constant 0 : i32
    return %c0_i32, %c0_i32_0 : i32, i32
  }
  func.func @transform_3(%arg0: i32) -> (i32, i32) {
    %c0_i32 = arith.constant 0 : i32
    %c0_i32_0 = arith.constant 0 : i32
    return %arg0, %c0_i32 : i32, i32
  }
  func.func @transform_4(%arg0: i32) -> (i32, i32) {
    %c0_i32 = arith.constant 0 : i32
    %c0_i32_0 = arith.constant 0 : i32
    return %arg0, %c0_i32 : i32, i32
  }
}

module attributes {stable_mosaic.version = 11 : i64} {
  func.func @_matmul_stats_kernel(%arg0: i32, %arg1: memref<128x128xf32, #tpu.memory_space<vmem>>, %arg2: memref<128x128xf32, #tpu.memory_space<vmem>>, %arg3: memref<128x128xf32, #tpu.memory_space<vmem>>, %arg4: memref<8x128xf32, #tpu.memory_space<vmem>>, %arg5: memref<8x128xf32, #tpu.memory_space<vmem>>) attributes {dimension_semantics = [#tpu.dimension_semantics<arbitrary>], iteration_bounds = array<i64: 1>, scalar_prefetch = 0 : i64, scratch_operands = 0 : i64, tpu.core_type = #tpu.core_type<tc>, window_params = [{transform_indices = @transform_0, window_bounds = array<i64: 128, 128>}, {pipeline_mode = #tpu.pipeline_mode<synchronous>, transform_indices = @transform_1, window_bounds = array<i64: 128, 128>}, {transform_indices = @transform_2, window_bounds = array<i64: 128, 128>}, {pipeline_mode = #tpu.pipeline_mode<synchronous>, transform_indices = @transform_3, window_bounds = array<i64: 8, 128>}, {pipeline_mode = #tpu.pipeline_mode<synchronous>, transform_indices = @transform_4, window_bounds = array<i64: 8, 128>}]} {
    %c0_i32 = arith.constant 0 : i32
    %0 = arith.cmpi eq, %arg0, %c0_i32 : i32
    %1 = arith.extui %0 : i1 to i32
    %c0_i32_0 = arith.constant 0 : i32
    %2 = arith.cmpi ne, %1, %c0_i32_0 : i32
    scf.if %2 {
      %cst_16 = arith.constant 0.000000e+00 : f32
      %17 = vector.broadcast %cst_16 : f32 to vector<8x128xf32>
      %c0_17 = arith.constant 0 : index
      %c0_18 = arith.constant 0 : index
      %18 = vector.load %arg4[%c0_17, %c0_18] : memref<8x128xf32, #tpu.memory_space<vmem>>, vector<8x128xf32>
      tpu.vector_store %arg4[%c0_17, %c0_18], %17 {strides = array<i32>} : memref<8x128xf32, #tpu.memory_space<vmem>>, vector<8x128xf32>,
      %cst_19 = arith.constant 0.000000e+00 : f32
      %19 = vector.broadcast %cst_19 : f32 to vector<8x128xf32>
      %c0_20 = arith.constant 0 : index
      %c0_21 = arith.constant 0 : index
      %20 = vector.load %arg5[%c0_20, %c0_21] : memref<8x128xf32, #tpu.memory_space<vmem>>, vector<8x128xf32>
      tpu.vector_store %arg5[%c0_20, %c0_21], %19 {strides = array<i32>} : memref<8x128xf32, #tpu.memory_space<vmem>>, vector<8x128xf32>,
    } else {
    }
    %c0 = arith.constant 0 : index
    %c0_1 = arith.constant 0 : index
    %3 = vector.load %arg1[%c0, %c0_1] : memref<128x128xf32, #tpu.memory_space<vmem>>, vector<128x128xf32>
    %c0_2 = arith.constant 0 : index
    %c0_3 = arith.constant 0 : index
    %4 = vector.load %arg2[%c0_2, %c0_3] : memref<128x128xf32, #tpu.memory_space<vmem>>, vector<128x128xf32>
    %cst = arith.constant dense<0.000000e+00> : vector<128x128xf32>
    %5 = tpu.matmul %3, %4, %cst {dimension_numbers = #tpu.dot_dimension_numbers<[1], [0], [0], [1], [0, 0, 1, 1], [], []>} : vector<128x128xf32>, vector<128x128xf32>, vector<128x128xf32> -> vector<128x128xf32>
    %c0_4 = arith.constant 0 : index
    %c0_5 = arith.constant 0 : index
    %6 = vector.load %arg3[%c0_4, %c0_5] : memref<128x128xf32, #tpu.memory_space<vmem>>, vector<128x128xf32>
    tpu.vector_store %arg3[%c0_4, %c0_5], %5 {strides = array<i32>} : memref<128x128xf32, #tpu.memory_space<vmem>>, vector<128x128xf32>,
    %7 = vector.shape_cast %5 : vector<128x128xf32> to vector<16x8x128xf32>
    %c0_6 = arith.constant 0 : index
    %c0_7 = arith.constant 0 : index
    %8 = vector.load %arg4[%c0_6, %c0_7] : memref<8x128xf32, #tpu.memory_space<vmem>>, vector<8x128xf32>
    %cst_8 = arith.constant dense<0.000000e+00> : vector<8x128xf32>
    %9 = vector.multi_reduction <add>, %7, %cst_8 [0] : vector<16x8x128xf32> to vector<8x128xf32>
    %10 = arith.addf %8, %9 : vector<8x128xf32>
    %c0_9 = arith.constant 0 : index
    %c0_10 = arith.constant 0 : index
    %11 = vector.load %arg4[%c0_9, %c0_10] : memref<8x128xf32, #tpu.memory_space<vmem>>, vector<8x128xf32>
    tpu.vector_store %arg4[%c0_9, %c0_10], %10 {strides = array<i32>} : memref<8x128xf32, #tpu.memory_space<vmem>>, vector<8x128xf32>,
    %c0_11 = arith.constant 0 : index
    %c0_12 = arith.constant 0 : index
    %12 = vector.load %arg5[%c0_11, %c0_12] : memref<8x128xf32, #tpu.memory_space<vmem>>, vector<8x128xf32>
    %13 = arith.mulf %7, %7 : vector<16x8x128xf32>
    %cst_13 = arith.constant dense<0.000000e+00> : vector<8x128xf32>
    %14 = vector.multi_reduction <add>, %13, %cst_13 [0] : vector<16x8x128xf32> to vector<8x128xf32>
    %15 = arith.addf %12, %14 : vector<8x128xf32>
    %c0_14 = arith.constant 0 : index
    %c0_15 = arith.constant 0 : index
    %16 = vector.load %arg5[%c0_14, %c0_15] : memref<8x128xf32, #tpu.memory_space<vmem>>, vector<8x128xf32>
    tpu.vector_store %arg5[%c0_14, %c0_15], %15 {strides = array<i32>} : memref<8x128xf32, #tpu.memory_space<vmem>>, vector<8x128xf32>,
    return
  }
  func.func @transform_0(%arg0: i32) -> (i32, i32) {
    %c0_i32 = arith.constant 0 : i32
    %c0_i32_0 = arith.constant 0 : i32
    return %arg0, %c0_i32 : i32, i32
  }
  func.func @transform_1(%arg0: i32) -> (i32, i32) {
    %c0_i32 = arith.constant 0 : i32
    %c0_i32_0 = arith.constant 0 : i32
    %c0_i32_1 = arith.constant 0 : i32
    return %c0_i32, %c0_i32_0 : i32, i32
  }
  func.func @transform_2(%arg0: i32) -> (i32, i32) {
    %c0_i32 = arith.constant 0 : i32
    %c0_i32_0 = arith.constant 0 : i32
    return %arg0, %c0_i32 : i32, i32
  }
  func.func @transform_3(%arg0: i32) -> (i32, i32) {
    %c0_i32 = arith.constant 0 : i32
    %c0_i32_0 = arith.constant 0 : i32
    %c0_i32_1 = arith.constant 0 : i32
    return %c0_i32, %c0_i32_0 : i32, i32
  }
  func.func @transform_4(%arg0: i32) -> (i32, i32) {
    %c0_i32 = arith.constant 0 : i32
    %c0_i32_0 = arith.constant 0 : i32
    %c0_i32_1 = arith.constant 0 : i32
    return %c0_i32, %c0_i32_0 : i32, i32
  }
}

module attributes {stable_mosaic.version = 11 : i64} {
  func.func @_bn_lrelu_kernel(%arg0: i32, %arg1: memref<128x128xf32, #tpu.memory_space<vmem>>, %arg2: memref<1x128xf32, #tpu.memory_space<vmem>>, %arg3: memref<1x128xf32, #tpu.memory_space<vmem>>, %arg4: memref<128x128xf32, #tpu.memory_space<vmem>>) attributes {dimension_semantics = [#tpu.dimension_semantics<parallel>], iteration_bounds = array<i64: 1>, scalar_prefetch = 0 : i64, scratch_operands = 0 : i64, tpu.core_type = #tpu.core_type<tc>, window_params = [{transform_indices = @transform_0, window_bounds = array<i64: 128, 128>}, {pipeline_mode = #tpu.pipeline_mode<synchronous>, transform_indices = @transform_1, window_bounds = array<i64: 1, 128>}, {pipeline_mode = #tpu.pipeline_mode<synchronous>, transform_indices = @transform_2, window_bounds = array<i64: 1, 128>}, {transform_indices = @transform_3, window_bounds = array<i64: 128, 128>}]} {
    %c0 = arith.constant 0 : index
    %c0_0 = arith.constant 0 : index
    %0 = vector.load %arg1[%c0, %c0_0] : memref<128x128xf32, #tpu.memory_space<vmem>>, vector<128x128xf32>
    %c0_1 = arith.constant 0 : index
    %c0_2 = arith.constant 0 : index
    %1 = vector.load %arg2[%c0_1, %c0_2] : memref<1x128xf32, #tpu.memory_space<vmem>>, vector<1x128xf32>
    %2 = vector.broadcast %1 : vector<1x128xf32> to vector<128x128xf32>
    %3 = arith.mulf %0, %2 : vector<128x128xf32>
    %c0_3 = arith.constant 0 : index
    %c0_4 = arith.constant 0 : index
    %4 = vector.load %arg3[%c0_3, %c0_4] : memref<1x128xf32, #tpu.memory_space<vmem>>, vector<1x128xf32>
    %5 = vector.broadcast %4 : vector<1x128xf32> to vector<128x128xf32>
    %6 = arith.addf %3, %5 : vector<128x128xf32>
    %cst = arith.constant 0.000000e+00 : f32
    %7 = vector.broadcast %cst : f32 to vector<128x128xf32>
    %8 = arith.cmpf oge, %6, %7 : vector<128x128xf32>
    %cst_5 = arith.constant 0.00999999977 : f32
    %9 = vector.broadcast %cst_5 : f32 to vector<128x128xf32>
    %10 = arith.mulf %9, %6 : vector<128x128xf32>
    %11 = arith.select %8, %6, %10 : vector<128x128xi1>, vector<128x128xf32>
    %c0_6 = arith.constant 0 : index
    %c0_7 = arith.constant 0 : index
    %12 = vector.load %arg4[%c0_6, %c0_7] : memref<128x128xf32, #tpu.memory_space<vmem>>, vector<128x128xf32>
    tpu.vector_store %arg4[%c0_6, %c0_7], %11 {strides = array<i32>} : memref<128x128xf32, #tpu.memory_space<vmem>>, vector<128x128xf32>,
    return
  }
  func.func @transform_0(%arg0: i32) -> (i32, i32) {
    %c0_i32 = arith.constant 0 : i32
    %c0_i32_0 = arith.constant 0 : i32
    return %arg0, %c0_i32 : i32, i32
  }
  func.func @transform_1(%arg0: i32) -> (i32, i32) {
    %c0_i32 = arith.constant 0 : i32
    %c0_i32_0 = arith.constant 0 : i32
    %c0_i32_1 = arith.constant 0 : i32
    return %c0_i32, %c0_i32_0 : i32, i32
  }
  func.func @transform_2(%arg0: i32) -> (i32, i32) {
    %c0_i32 = arith.constant 0 : i32
    %c0_i32_0 = arith.constant 0 : i32
    %c0_i32_1 = arith.constant 0 : i32
    return %c0_i32, %c0_i32_0 : i32, i32
  }
  func.func @transform_3(%arg0: i32) -> (i32, i32) {
    %c0_i32 = arith.constant 0 : i32
    %c0_i32_0 = arith.constant 0 : i32
    return %arg0, %c0_i32 : i32, i32
  }
}

</mosaic_0001>

<llo_original>
// kernel: res_block_forward.10
$region0: #{res_block_forward.10}
  #allocation0 [shape = 'u32[]', space=smem, size = 0x4, offset = 0x4, fixed_abs, tag = 'smem constant byte address 0x4 - core index']
  #allocation1 [shape = 'u32[144,128]{1,0:T(1,128)}', space=vmem, size = 0x12000, scoped, tag = 'internal scratch']
  %s0 = inlined_call_operand.vmem [shape: f32[512,128], index: 0, kind: input, shape index: {}]
  %s1 = inlined_call_operand.vmem [shape: f32[128,128], index: 1, kind: input, shape index: {}]
  %s2 = inlined_call_operand.vmem [shape: f32[512,128], index: 2, kind: output, shape index: {0}]
  %s3 = inlined_call_operand.vmem [shape: f32[8,128], index: 3, kind: output, shape index: {1}]
  %s4 = inlined_call_operand.vmem [shape: f32[8,128], index: 4, kind: output, shape index: {2}]
  %5 = xla_tuple %s2, %s3, %s4
  %s6 = sld [smem:[#allocation0]]
  $region38: #{res_block_forward.10} parent=0
    _
  %s8 = ssub.s32 1, %s6
  %s9 = scalar_select 0, %s8, %s6
  // Predicated region
  $region2: #{res_block_forward.10} parent=0 // pred_check
    _
  $region3: #{res_block_forward.10} parent=0 // pred_check_branch
    %11 = sbr.rel (0) target = $region5
  $region4: #{res_block_forward.10} parent=0 // pred_region
    _
  $region5: #{res_block_forward.10} parent=0 // pred_fallthru
    _
  // Predicated region
  $region6: #{res_block_forward.10} parent=0 // pred_check
    _
  $region7: #{res_block_forward.10} parent=0 // pred_check_branch
    %13 = sbr.rel (0) target = $region9
  $region8: #{res_block_forward.10} parent=0 // pred_region
    _
  $region9: #{res_block_forward.10} parent=0 // pred_fallthru
    _
  %p14 = scmp.eq.s32.totalorder 0, 0
  // Predicated region
  $region10: #{res_block_forward.10} parent=0 // pred_check
    %p15 = pneg %p14
  $region11: #{res_block_forward.10} parent=0 // pred_check_branch
    %17 = sbr.rel (%p15) target = $region13
  $region12: #{res_block_forward.10} parent=0 // pred_region
    %18 = vst [vmem:[%s3] sm:$0xff] 0.0
    %19 = vst [vmem:[%s4] sm:$0xff] 0.0
  $region13: #{res_block_forward.10} parent=0 // pred_fallthru
    _
  %v20 = vld [vmem:[%s0] sm:$0xff]
  %v21 = vld [vmem:[%s0 + $0x8] sm:$0xff]
  %v22 = vld [vmem:[%s0 + $0x10] sm:$0xff]
  %v23 = vld [vmem:[%s0 + $0x18] sm:$0xff]
  %v24 = vld [vmem:[%s0 + $0x20] sm:$0xff]
  %v25 = vld [vmem:[%s0 + $0x28] sm:$0xff]
  %v26 = vld [vmem:[%s0 + $0x30] sm:$0xff]
  %v27 = vld [vmem:[%s0 + $0x38] sm:$0xff]
  %v28 = vld [vmem:[%s0 + $0x40] sm:$0xff]
  %v29 = vld [vmem:[%s0 + $0x48] sm:$0xff]
  %v30 = vld [vmem:[%s0 + $0x50] sm:$0xff]
  %v31 = vld [vmem:[%s0 + $0x58] sm:$0xff]
  %v32 = vld [vmem:[%s0 + $0x60] sm:$0xff]
  %v33 = vld [vmem:[%s0 + $0x68] sm:$0xff]
  %v34 = vld [vmem:[%s0 + $0x70] sm:$0xff]
  %v35 = vld [vmem:[%s0 + $0x78] sm:$0xff]
  %v36 = vld [vmem:[%s0 + $0x80] sm:$0xff]
  %v37 = vld [vmem:[%s0 + $0x88] sm:$0xff]
  %v38 = vld [vmem:[%s0 + $0x90] sm:$0xff]
  %v39 = vld [vmem:[%s0 + $0x98] sm:$0xff]
  %v40 = vld [vmem:[%s0 + $0xa0] sm:$0xff]
  %v41 = vld [vmem:[%s0 + $0xa8] sm:$0xff]
  %v42 = vld [vmem:[%s0 + $0xb0] sm:$0xff]
  %v43 = vld [vmem:[%s0 + $0xb8] sm:$0xff]
  %v44 = vld [vmem:[%s0 + $0xc0] sm:$0xff]
  %v45 = vld [vmem:[%s0 + $0xc8] sm:$0xff]
  %v46 = vld [vmem:[%s0 + $0xd0] sm:$0xff]
  %v47 = vld [vmem:[%s0 + $0xd8] sm:$0xff]
  %v48 = vld [vmem:[%s0 + $0xe0] sm:$0xff]
  %v49 = vld [vmem:[%s0 + $0xe8] sm:$0xff]
  %v50 = vld [vmem:[%s0 + $0xf0] sm:$0xff]
  %v51 = vld [vmem:[%s0 + $0xf8] sm:$0xff]
  %v52 = vld [vmem:[%s0 + $0x100] sm:$0xff]
  %v53 = vld [vmem:[%s0 + $0x108] sm:$0xff]
  %v54 = vld [vmem:[%s0 + $0x110] sm:$0xff]
  %v55 = vld [vmem:[%s0 + $0x118] sm:$0xff]
  %v56 = vld [vmem:[%s0 + $0x120] sm:$0xff]
  %v57 = vld [vmem:[%s0 + $0x128] sm:$0xff]
  %v58 = vld [vmem:[%s0 + $0x130] sm:$0xff]
  %v59 = vld [vmem:[%s0 + $0x138] sm:$0xff]
  %v60 = vld [vmem:[%s0 + $0x140] sm:$0xff]
  %v61 = vld [vmem:[%s0 + $0x148] sm:$0xff]
  %v62 = vld [vmem:[%s0 + $0x150] sm:$0xff]
  %v63 = vld [vmem:[%s0 + $0x158] sm:$0xff]
  %v64 = vld [vmem:[%s0 + $0x160] sm:$0xff]
  %v65 = vld [vmem:[%s0 + $0x168] sm:$0xff]
  %v66 = vld [vmem:[%s0 + $0x170] sm:$0xff]
  %v67 = vld [vmem:[%s0 + $0x178] sm:$0xff]
  %v68 = vld [vmem:[%s0 + $0x180] sm:$0xff]
  %v69 = vld [vmem:[%s0 + $0x188] sm:$0xff]
  %v70 = vld [vmem:[%s0 + $0x190] sm:$0xff]
  %v71 = vld [vmem:[%s0 + $0x198] sm:$0xff]
  %v72 = vld [vmem:[%s0 + $0x1a0] sm:$0xff]
  %v73 = vld [vmem:[%s0 + $0x1a8] sm:$0xff]
  %v74 = vld [vmem:[%s0 + $0x1b0] sm:$0xff]
  %v75 = vld [vmem:[%s0 + $0x1b8] sm:$0xff]
  %v76 = vld [vmem:[%s0 + $0x1c0] sm:$0xff]
  %v77 = vld [vmem:[%s0 + $0x1c8] sm:$0xff]
  %v78 = vld [vmem:[%s0 + $0x1d0] sm:$0xff]
  %v79 = vld [vmem:[%s0 + $0x1d8] sm:$0xff]
  %v80 = vld [vmem:[%s0 + $0x1e0] sm:$0xff]
  %v81 = vld [vmem:[%s0 + $0x1e8] sm:$0xff]
  %v82 = vld [vmem:[%s0 + $0x1f0] sm:$0xff]
  %v83 = vld [vmem:[%s0 + $0x1f8] sm:$0xff]
  %v84 = vld [vmem:[%s1] sm:$0xff]
  %v85 = vld [vmem:[%s1 + $0x8] sm:$0xff]
  %v86 = vld [vmem:[%s1 + $0x10] sm:$0xff]
  %v87 = vld [vmem:[%s1 + $0x18] sm:$0xff]
  %v88 = vld [vmem:[%s1 + $0x20] sm:$0xff]
  %v89 = vld [vmem:[%s1 + $0x28] sm:$0xff]
  %v90 = vld [vmem:[%s1 + $0x30] sm:$0xff]
  %v91 = vld [vmem:[%s1 + $0x38] sm:$0xff]
  %v92 = vld [vmem:[%s1 + $0x40] sm:$0xff]
  %v93 = vld [vmem:[%s1 + $0x48] sm:$0xff]
  %v94 = vld [vmem:[%s1 + $0x50] sm:$0xff]
  %v95 = vld [vmem:[%s1 + $0x58] sm:$0xff]
  %v96 = vld [vmem:[%s1 + $0x60] sm:$0xff]
  %v97 = vld [vmem:[%s1 + $0x68] sm:$0xff]
  %v98 = vld [vmem:[%s1 + $0x70] sm:$0xff]
  %v99 = vld [vmem:[%s1 + $0x78] sm:$0xff]
  %100 = vmatprep.subr.mxu0 0.0
  %101 = vmatpush1.msra.mxu0 %v84
  %102 = vmatprep.subr.mxu0 0.0
  %103 = vmatpush1.msra.mxu0 %v85
  %104 = vmatprep.subr.mxu0 0.0
  %105 = vmatpush1.msra.mxu0 %v86
  %106 = vmatprep.subr.mxu0 0.0
  %107 = vmatpush1.msra.mxu0 %v87
  %108 = vmatprep.subr.mxu0 0.0
  %109 = vmatpush1.msra.mxu0 %v88
  %110 = vmatprep.subr.mxu0 0.0
  %111 = vmatpush1.msra.mxu0 %v89
  %112 = vmatprep.subr.mxu0 0.0
  %113 = vmatpush1.msra.mxu0 %v90
  %114 = vmatprep.subr.mxu0 0.0
  %115 = vmatpush1.msra.mxu0 %v91
  %116 = vmatprep.subr.mxu0 0.0
  %117 = vmatpush1.msra.mxu0 %v92
  %118 = vmatprep.subr.mxu0 0.0
  %119 = vmatpush1.msra.mxu0 %v93
  %120 = vmatprep.subr.mxu0 0.0
  %121 = vmatpush1.msra.mxu0 %v94
  %122 = vmatprep.subr.mxu0 0.0
  %123 = vmatpush1.msra.mxu0 %v95
  %124 = vmatprep.subr.mxu0 0.0
  %125 = vmatpush1.msra.mxu0 %v96
  %126 = vmatprep.subr.mxu0 0.0
  %127 = vmatpush1.msra.mxu0 %v97
  %128 = vmatprep.subr.mxu0 0.0
  %129 = vmatpush1.msra.mxu0 %v98
  %130 = vmatprep.subr.mxu0 0.0
  %131 = vmatpush1.msra.mxu0 %v99
  %132 = vmatprep.subr.mxu0 0.0
  %133 = vmatpush1.msra.mxu0 0.0
  %134 = vmatprep.subr.mxu0 0.0
  %135 = vmatpush1.msra.mxu0 0.0
  %136 = vmatprep.subr.mxu0 0.0
  %137 = vmatpush1.msra.mxu0 0.0
  %138 = vmatprep.subr.mxu0 0.0
  %139 = vmatpush1.msra.mxu0 0.0
  %140 = vmatprep.subr.mxu0 0.0
  %141 = vmatpush1.msra.mxu0 0.0
  %142 = vmatprep.subr.mxu0 0.0
  %143 = vmatpush1.msra.mxu0 0.0
  %144 = vmatprep.subr.mxu0 0.0
  %145 = vmatpush1.msra.mxu0 0.0
  %146 = vmatprep.subr.mxu0 0.0
  %147 = vmatpush1.msra.mxu0 0.0
  %148 = vmatprep.subr.mxu0 0.0
  %149 = vmatpush1.msra.mxu0 0.0
  %150 = vmatprep.subr.mxu0 0.0
  %151 = vmatpush1.msra.mxu0 0.0
  %152 = vmatprep.subr.mxu0 0.0
  %153 = vmatpush1.msra.mxu0 0.0
  %154 = vmatprep.subr.mxu0 0.0
  %155 = vmatpush1.msra.mxu0 0.0
  %156 = vmatprep.subr.mxu0 0.0
  %157 = vmatpush1.msra.mxu0 0.0
  %158 = vmatprep.subr.mxu0 0.0
  %159 = vmatpush1.msra.mxu0 0.0
  %160 = vmatprep.subr.mxu0 0.0
  %161 = vmatpush1.msra.mxu0 0.0
  %162 = vmatprep.subr.mxu0 0.0
  %163 = vmatpush1.msra.mxu0 0.0
  %164 = vmatprep.mubr.f32.mxu0 0.0
  %165 = vmatmul.mubr.f32.gmra.mrb[0].mxu0 %v20
  %v166 = vpop.f32.mrb[0].mxu0
  %v167 = vadd.f32 0.0, %v166
  %v168 = vpop.f32.mrb[0].mxu0
  %169 = vmatprep.mubr.f32.mxu0 0.0
  %170 = vmatmul.mubr.f32.gmra.mrb[0].mxu0 %v21
  %v171 = vpop.f32.mrb[0].mxu0
  %v172 = vadd.f32 0.0, %v171
  %v173 = vpop.f32.mrb[0].mxu0
  %174 = vmatprep.mubr.f32.mxu0 0.0
  %175 = vmatmul.mubr.f32.gmra.mrb[0].mxu0 %v22
  %v176 = vpop.f32.mrb[0].mxu0
  %v177 = vadd.f32 0.0, %v176
  %v178 = vpop.f32.mrb[0].mxu0
  %179 = vmatprep.mubr.f32.mxu0 0.0
  %180 = vmatmul.mubr.f32.gmra.mrb[0].mxu0 %v23
  %v181 = vpop.f32.mrb[0].mxu0
  %v182 = vadd.f32 0.0, %v181
  %v183 = vpop.f32.mrb[0].mxu0
  %184 = vmatprep.mubr.f32.mxu0 0.0
  %185 = vmatmul.mubr.f32.gmra.mrb[0].mxu0 %v24
  %v186 = vpop.f32.mrb[0].mxu0
  %v187 = vadd.f32 0.0, %v186
  %v188 = vpop.f32.mrb[0].mxu0
  %189 = vmatprep.mubr.f32.mxu0 0.0
  %190 = vmatmul.mubr.f32.gmra.mrb[0].mxu0 %v25
  %v191 = vpop.f32.mrb[0].mxu0
  %v192 = vadd.f32 0.0, %v191
  %v193 = vpop.f32.mrb[0].mxu0
  %194 = vmatprep.mubr.f32.mxu0 0.0
  %195 = vmatmul.mubr.f32.gmra.mrb[0].mxu0 %v26
  %v196 = vpop.f32.mrb[0].mxu0
  %v197 = vadd.f32 0.0, %v196
  %v198 = vpop.f32.mrb[0].mxu0
  %199 = vmatprep.mubr.f32.mxu0 0.0
  %200 = vmatmul.mubr.f32.gmra.mrb[0].mxu0 %v27
  %v201 = vpop.f32.mrb[0].mxu0
  %v202 = vadd.f32 0.0, %v201
  %v203 = vpop.f32.mrb[0].mxu0
  %204 = vmatprep.mubr.f32.mxu0 0.0
  %205 = vmatmul.mubr.f32.gmra.mrb[0].mxu0 %v28
  %v206 = vpop.f32.mrb[0].mxu0
  %v207 = vadd.f32 0.0, %v206
  %v208 = vpop.f32.mrb[0].mxu0
  %209 = vmatprep.mubr.f32.mxu0 0.0
  %210 = vmatmul.mubr.f32.gmra.mrb[0].mxu0 %v29
  %v211 = vpop.f32.mrb[0].mxu0
  %v212 = vadd.f32 0.0, %v211
  %v213 = vpop.f32.mrb[0].mxu0
  %214 = vmatprep.mubr.f32.mxu0 0.0
  %215 = vmatmul.mubr.f32.gmra.mrb[0].mxu0 %v30
  %v216 = vpop.f32.mrb[0].mxu0
  %v217 = vadd.f32 0.0, %v216
  %v218 = vpop.f32.mrb[0].mxu0
  %219 = vmatprep.mubr.f32.mxu0 0.0
  %220 = vmatmul.mubr.f32.gmra.mrb[0].mxu0 %v31
  %v221 = vpop.f32.mrb[0].mxu0
  %v222 = vadd.f32 0.0, %v221
  %v223 = vpop.f32.mrb[0].mxu0
  %224 = vmatprep.mubr.f32.mxu0 0.0
  %225 = vmatmul.mubr.f32.gmra.mrb[0].mxu0 %v32
  %v226 = vpop.f32.mrb[0].mxu0
  %v227 = vadd.f32 0.0, %v226
  %v228 = vpop.f32.mrb[0].mxu0
  %229 = vmatprep.mubr.f32.mxu0 0.0
  %230 = vmatmul.mubr.f32.gmra.mrb[0].mxu0 %v33
  %v231 = vpop.f32.mrb[0].mxu0
  %v232 = vadd.f32 0.0, %v231
  %v233 = vpop.f32.mrb[0].mxu0
  %234 = vmatprep.mubr.f32.mxu0 0.0
  %235 = vmatmul.mubr.f32.gmra.mrb[0].mxu0 %v34
  %v236 = vpop.f32.mrb[0].mxu0
  %v237 = vadd.f32 0.0, %v236
  %v238 = vpop.f32.mrb[0].mxu0
  %239 = vmatprep.mubr.f32.mxu0 0.0
  %240 = vmatmul.mubr.f32.gmra.mrb[0].mxu0 %v35
  %v241 = vpop.f32.mrb[0].mxu0
  %v242 = vadd.f32 0.0, %v241
  %v243 = vpop.f32.mrb[0].mxu0
  %244 = vmatprep.mubr.f32.mxu0 0.0
  %245 = vmatmul.mubr.f32.gmra.mrb[0].mxu0 %v36
  %v246 = vpop.f32.mrb[0].mxu0
  %v247 = vadd.f32 0.0, %v246
  %v248 = vpop.f32.mrb[0].mxu0
  %249 = vmatprep.mubr.f32.mxu0 0.0
  %250 = vmatmul.mubr.f32.gmra.mrb[0].mxu0 %v37
  %v251 = vpop.f32.mrb[0].mxu0
  %v252 = vadd.f32 0.0, %v251
  %v253 = vpop.f32.mrb[0].mxu0
  %254 = vmatprep.mubr.f32.mxu0 0.0
  %255 = vmatmul.mubr.f32.gmra.mrb[0].mxu0 %v38
  %v256 = vpop.f32.mrb[0].mxu0
  %v257 = vadd.f32 0.0, %v256
  %v258 = vpop.f32.mrb[0].mxu0
  %259 = vmatprep.mubr.f32.mxu0 0.0
  %260 = vmatmul.mubr.f32.gmra.mrb[0].mxu0 %v39
  %v261 = vpop.f32.mrb[0].mxu0
  %v262 = vadd.f32 0.0, %v261
  %v263 = vpop.f32.mrb[0].mxu0
  %264 = vmatprep.mubr.f32.mxu0 0.0
  %265 = vmatmul.mubr.f32.gmra.mrb[0].mxu0 %v40
  %v266 = vpop.f32.mrb[0].mxu0
  %v267 = vadd.f32 0.0, %v266
  %v268 = vpop.f32.mrb[0].mxu0
  %269 = vmatprep.mubr.f32.mxu0 0.0
  %270 = vmatmul.mubr.f32.gmra.mrb[0].mxu0 %v41
  %v271 = vpop.f32.mrb[0].mxu0
  %v272 = vadd.f32 0.0, %v271
  %v273 = vpop.f32.mrb[0].mxu0
  %274 = vmatprep.mubr.f32.mxu0 0.0
  %275 = vmatmul.mubr.f32.gmra.mrb[0].mxu0 %v42
  %v276 = vpop.f32.mrb[0].mxu0
  %v277 = vadd.f32 0.0, %v276
  %v278 = vpop.f32.mrb[0].mxu0
  %279 = vmatprep.mubr.f32.mxu0 0.0
  %280 = vmatmul.mubr.f32.gmra.mrb[0].mxu0 %v43
  %v281 = vpop.f32.mrb[0].mxu0
  %v282 = vadd.f32 0.0, %v281
  %v283 = vpop.f32.mrb[0].mxu0
  %284 = vmatprep.mubr.f32.mxu0 0.0
  %285 = vmatmul.mubr.f32.gmra.mrb[0].mxu0 %v44
  %v286 = vpop.f32.mrb[0].mxu0
  %v287 = vadd.f32 0.0, %v286
  %v288 = vpop.f32.mrb[0].mxu0
  %289 = vmatprep.mubr.f32.mxu0 0.0
  %290 = vmatmul.mubr.f32.gmra.mrb[0].mxu0 %v45
  %v291 = vpop.f32.mrb[0].mxu0
  %v292 = vadd.f32 0.0, %v291
  %v293 = vpop.f32.mrb[0].mxu0
  %294 = vmatprep.mubr.f32.mxu0 0.0
  %295 = vmatmul.mubr.f32.gmra.mrb[0].mxu0 %v46
  %v296 = vpop.f32.mrb[0].mxu0
  %v297 = vadd.f32 0.0, %v296
  %v298 = vpop.f32.mrb[0].mxu0
  %299 = vmatprep.mubr.f32.mxu0 0.0
  %300 = vmatmul.mubr.f32.gmra.mrb[0].mxu0 %v47
  %v301 = vpop.f32.mrb[0].mxu0
  %v302 = vadd.f32 0.0, %v301
  %v303 = vpop.f32.mrb[0].mxu0
  %304 = vmatprep.mubr.f32.mxu0 0.0
  %305 = vmatmul.mubr.f32.gmra.mrb[0].mxu0 %v48
  %v306 = vpop.f32.mrb[0].mxu0
  %v307 = vadd.f32 0.0, %v306
  %v308 = vpop.f32.mrb[0].mxu0
  %309 = vmatprep.mubr.f32.mxu0 0.0
  %310 = vmatmul.mubr.f32.gmra.mrb[0].mxu0 %v49
  %v311 = vpop.f32.mrb[0].mxu0
  %v312 = vadd.f32 0.0, %v311
  %v313 = vpop.f32.mrb[0].mxu0
  %314 = vmatprep.mubr.f32.mxu0 0.0
  %315 = vmatmul.mubr.f32.gmra.mrb[0].mxu0 %v50
  %v316 = vpop.f32.mrb[0].mxu0
  %v317 = vadd.f32 0.0, %v316
  %v318 = vpop.f32.mrb[0].mxu0
  %319 = vmatprep.mubr.f32.mxu0 0.0
  %320 = vmatmul.mubr.f32.gmra.mrb[0].mxu0 %v51
  %v321 = vpop.f32.mrb[0].mxu0
  %v322 = vadd.f32 0.0, %v321
  %v323 = vpop.f32.mrb[0].mxu0
  %324 = vmatprep.mubr.f32.mxu0 0.0
  %325 = vmatmul.mubr.f32.gmra.mrb[0].mxu0 %v52
  %v326 = vpop.f32.mrb[0].mxu0
  %v327 = vadd.f32 0.0, %v326
  %v328 = vpop.f32.mrb[0].mxu0
  %329 = vmatprep.mubr.f32.mxu0 0.0
  %330 = vmatmul.mubr.f32.gmra.mrb[0].mxu0 %v53
  %v331 = vpop.f32.mrb[0].mxu0
  %v332 = vadd.f32 0.0, %v331
  %v333 = vpop.f32.mrb[0].mxu0
  %334 = vmatprep.mubr.f32.mxu0 0.0
  %335 = vmatmul.mubr.f32.gmra.mrb[0].mxu0 %v54
  %v336 = vpop.f32.mrb[0].mxu0
  %v337 = vadd.f32 0.0, %v336
  %v338 = vpop.f32.mrb[0].mxu0
  %339 = vmatprep.mubr.f32.mxu0 0.0
  %340 = vmatmul.mubr.f32.gmra.mrb[0].mxu0 %v55
  %v341 = vpop.f32.mrb[0].mxu0
  %v342 = vadd.f32 0.0, %v341
  %v343 = vpop.f32.mrb[0].mxu0
  %344 = vmatprep.mubr.f32.mxu0 0.0
  %345 = vmatmul.mubr.f32.gmra.mrb[0].mxu0 %v56
  %v346 = vpop.f32.mrb[0].mxu0
  %v347 = vadd.f32 0.0, %v346
  %v348 = vpop.f32.mrb[0].mxu0
  %349 = vmatprep.mubr.f32.mxu0 0.0
  %350 = vmatmul.mubr.f32.gmra.mrb[0].mxu0 %v57
  %v351 = vpop.f32.mrb[0].mxu0
  %v352 = vadd.f32 0.0, %v351
  %v353 = vpop.f32.mrb[0].mxu0
  %354 = vmatprep.mubr.f32.mxu0 0.0
  %355 = vmatmul.mubr.f32.gmra.mrb[0].mxu0 %v58
  %v356 = vpop.f32.mrb[0].mxu0
  %v357 = vadd.f32 0.0, %v356
  %v358 = vpop.f32.mrb[0].mxu0
  %359 = vmatprep.mubr.f32.mxu0 0.0
  %360 = vmatmul.mubr.f32.gmra.mrb[0].mxu0 %v59
  %v361 = vpop.f32.mrb[0].mxu0
  %v362 = vadd.f32 0.0, %v361
  %v363 = vpop.f32.mrb[0].mxu0
  %364 = vmatprep.mubr.f32.mxu0 0.0
  %365 = vmatmul.mubr.f32.gmra.mrb[0].mxu0 %v60
  %v366 = vpop.f32.mrb[0].mxu0
  %v367 = vadd.f32 0.0, %v366
  %v368 = vpop.f32.mrb[0].mxu0
  %369 = vmatprep.mubr.f32.mxu0 0.0
  %370 = vmatmul.mubr.f32.gmra.mrb[0].mxu0 %v61
  %v371 = vpop.f32.mrb[0].mxu0
  %v372 = vadd.f32 0.0, %v371
  %v373 = vpop.f32.mrb[0].mxu0
  %374 = vmatprep.mubr.f32.mxu0 0.0
  %375 = vmatmul.mubr.f32.gmra.mrb[0].mxu0 %v62
  %v376 = vpop.f32.mrb[0].mxu0
  %v377 = vadd.f32 0.0, %v376
  %v378 = vpop.f32.mrb[0].mxu0
  %379 = vmatprep.mubr.f32.mxu0 0.0
  %380 = vmatmul.mubr.f32.gmra.mrb[0].mxu0 %v63
  %v381 = vpop.f32.mrb[0].mxu0
  %v382 = vadd.f32 0.0, %v381
  %v383 = vpop.f32.mrb[0].mxu0
  %384 = vmatprep.mubr.f32.mxu0 0.0
  %385 = vmatmul.mubr.f32.gmra.mrb[0].mxu0 %v64
  %v386 = vpop.f32.mrb[0].mxu0
  %v387 = vadd.f32 0.0, %v386
  %v388 = vpop.f32.mrb[0].mxu0
  %389 = vmatprep.mubr.f32.mxu0 0.0
  %390 = vmatmul.mubr.f32.gmra.mrb[0].mxu0 %v65
  %v391 = vpop.f32.mrb[0].mxu0
  %v392 = vadd.f32 0.0, %v391
  %v393 = vpop.f32.mrb[0].mxu0
  %394 = vmatprep.mubr.f32.mxu0 0.0
  %395 = vmatmul.mubr.f32.gmra.mrb[0].mxu0 %v66
  %v396 = vpop.f32.mrb[0].mxu0
  %v397 = vadd.f32 0.0, %v396
  %v398 = vpop.f32.mrb[0].mxu0
  %399 = vmatprep.mubr.f32.mxu0 0.0
  %400 = vmatmul.mubr.f32.gmra.mrb[0].mxu0 %v67
  %v401 = vpop.f32.mrb[0].mxu0
  %v402 = vadd.f32 0.0, %v401
  %v403 = vpop.f32.mrb[0].mxu0
  %404 = vmatprep.mubr.f32.mxu0 0.0
  %405 = vmatmul.mubr.f32.gmra.mrb[0].mxu0 %v68
  %v406 = vpop.f32.mrb[0].mxu0
  %v407 = vadd.f32 0.0, %v406
  %v408 = vpop.f32.mrb[0].mxu0
  %409 = vmatprep.mubr.f32.mxu0 0.0
  %410 = vmatmul.mubr.f32.gmra.mrb[0].mxu0 %v69
  %v411 = vpop.f32.mrb[0].mxu0
  %v412 = vadd.f32 0.0, %v411
  %v413 = vpop.f32.mrb[0].mxu0
  %414 = vmatprep.mubr.f32.mxu0 0.0
  %415 = vmatmul.mubr.f32.gmra.mrb[0].mxu0 %v70
  %v416 = vpop.f32.mrb[0].mxu0
  %v417 = vadd.f32 0.0, %v416
  %v418 = vpop.f32.mrb[0].mxu0
  %419 = vmatprep.mubr.f32.mxu0 0.0
  %420 = vmatmul.mubr.f32.gmra.mrb[0].mxu0 %v71
  %v421 = vpop.f32.mrb[0].mxu0
  %v422 = vadd.f32 0.0, %v421
  %v423 = vpop.f32.mrb[0].mxu0
  %424 = vmatprep.mubr.f32.mxu0 0.0
  %425 = vmatmul.mubr.f32.gmra.mrb[0].mxu0 %v72
  %v426 = vpop.f32.mrb[0].mxu0
  %v427 = vadd.f32 0.0, %v426
  %v428 = vpop.f32.mrb[0].mxu0
  %429 = vmatprep.mubr.f32.mxu0 0.0
  %430 = vmatmul.mubr.f32.gmra.mrb[0].mxu0 %v73
  %v431 = vpop.f32.mrb[0].mxu0
  %v432 = vadd.f32 0.0, %v431
  %v433 = vpop.f32.mrb[0].mxu0
  %434 = vmatprep.mubr.f32.mxu0 0.0
  %435 = vmatmul.mubr.f32.gmra.mrb[0].mxu0 %v74
  %v436 = vpop.f32.mrb[0].mxu0
  %v437 = vadd.f32 0.0, %v436
  %v438 = vpop.f32.mrb[0].mxu0
  %439 = vmatprep.mubr.f32.mxu0 0.0
  %440 = vmatmul.mubr.f32.gmra.mrb[0].mxu0 %v75
  %v441 = vpop.f32.mrb[0].mxu0
  %v442 = vadd.f32 0.0, %v441
  %v443 = vpop.f32.mrb[0].mxu0
  %444 = vmatprep.mubr.f32.mxu0 0.0
  %445 = vmatmul.mubr.f32.gmra.mrb[0].mxu0 %v76
  %v446 = vpop.f32.mrb[0].mxu0
  %v447 = vadd.f32 0.0, %v446
  %v448 = vpop.f32.mrb[0].mxu0
  %449 = vmatprep.mubr.f32.mxu0 0.0
  %450 = vmatmul.mubr.f32.gmra.mrb[0].mxu0 %v77
  %v451 = vpop.f32.mrb[0].mxu0
  %v452 = vadd.f32 0.0, %v451
  %v453 = vpop.f32.mrb[0].mxu0
  %454 = vmatprep.mubr.f32.mxu0 0.0
  %455 = vmatmul.mubr.f32.gmra.mrb[0].mxu0 %v78
  %v456 = vpop.f32.mrb[0].mxu0
  %v457 = vadd.f32 0.0, %v456
  %v458 = vpop.f32.mrb[0].mxu0
  %459 = vmatprep.mubr.f32.mxu0 0.0
  %460 = vmatmul.mubr.f32.gmra.mrb[0].mxu0 %v79
  %v461 = vpop.f32.mrb[0].mxu0
  %v462 = vadd.f32 0.0, %v461
  %v463 = vpop.f32.mrb[0].mxu0
  %464 = vmatprep.mubr.f32.mxu0 0.0
  %465 = vmatmul.mubr.f32.gmra.mrb[0].mxu0 %v80
  %v466 = vpop.f32.mrb[0].mxu0
  %v467 = vadd.f32 0.0, %v466
  %v468 = vpop.f32.mrb[0].mxu0
  %469 = vmatprep.mubr.f32.mxu0 0.0
  %470 = vmatmul.mubr.f32.gmra.mrb[0].mxu0 %v81
  %v471 = vpop.f32.mrb[0].mxu0
  %v472 = vadd.f32 0.0, %v471
  %v473 = vpop.f32.mrb[0].mxu0
  %474 = vmatprep.mubr.f32.mxu0 0.0
  %475 = vmatmul.mubr.f32.gmra.mrb[0].mxu0 %v82
  %v476 = vpop.f32.mrb[0].mxu0
  %v477 = vadd.f32 0.0, %v476
  %v478 = vpop.f32.mrb[0].mxu0
  %479 = vmatprep.mubr.f32.mxu0 0.0
  %480 = vmatmul.mubr.f32.gmra.mrb[0].mxu0 %v83
  %v481 = vpop.f32.mrb[0].mxu0
  %v482 = vadd.f32 0.0, %v481
  %v483 = vpop.f32.mrb[0].mxu0
  %484 = vdwg.mxu0
  %485 = vst [vmem:[%s2] sm:$0xff] %v167
  %486 = vst [vmem:[%s2 + $0x8] sm:$0xff] %v172
  %487 = vst [vmem:[%s2 + $0x10] sm:$0xff] %v177
  %488 = vst [vmem:[%s2 + $0x18] sm:$0xff] %v182
  %489 = vst [vmem:[%s2 + $0x20] sm:$0xff] %v187
  %490 = vst [vmem:[%s2 + $0x28] sm:$0xff] %v192
  %491 = vst [vmem:[%s2 + $0x30] sm:$0xff] %v197
  %492 = vst [vmem:[%s2 + $0x38] sm:$0xff] %v202
  %493 = vst [vmem:[%s2 + $0x40] sm:$0xff] %v207
  %494 = vst [vmem:[%s2 + $0x48] sm:$0xff] %v212
  %495 = vst [vmem:[%s2 + $0x50] sm:$0xff] %v217
  %496 = vst [vmem:[%s2 + $0x58] sm:$0xff] %v222
  %497 = vst [vmem:[%s2 + $0x60] sm:$0xff] %v227
  %498 = vst [vmem:[%s2 + $0x68] sm:$0xff] %v232
  %499 = vst [vmem:[%s2 + $0x70] sm:$0xff] %v237
  %500 = vst [vmem:[%s2 + $0x78] sm:$0xff] %v242
  %501 = vst [vmem:[%s2 + $0x80] sm:$0xff] %v247
  %502 = vst [vmem:[%s2 + $0x88] sm:$0xff] %v252
  %503 = vst [vmem:[%s2 + $0x90] sm:$0xff] %v257
  %504 = vst [vmem:[%s2 + $0x98] sm:$0xff] %v262
  %505 = vst [vmem:[%s2 + $0xa0] sm:$0xff] %v267
  %506 = vst [vmem:[%s2 + $0xa8] sm:$0xff] %v272
  %507 = vst [vmem:[%s2 + $0xb0] sm:$0xff] %v277
  %508 = vst [vmem:[%s2 + $0xb8] sm:$0xff] %v282
  %509 = vst [vmem:[%s2 + $0xc0] sm:$0xff] %v287
  %510 = vst [vmem:[%s2 + $0xc8] sm:$0xff] %v292
  %511 = vst [vmem:[%s2 + $0xd0] sm:$0xff] %v297
  %512 = vst [vmem:[%s2 + $0xd8] sm:$0xff] %v302
  %513 = vst [vmem:[%s2 + $0xe0] sm:$0xff] %v307
  %514 = vst [vmem:[%s2 + $0xe8] sm:$0xff] %v312
  %515 = vst [vmem:[%s2 + $0xf0] sm:$0xff] %v317
  %516 = vst [vmem:[%s2 + $0xf8] sm:$0xff] %v322
  %517 = vst [vmem:[%s2 + $0x100] sm:$0xff] %v327
  %518 = vst [vmem:[%s2 + $0x108] sm:$0xff] %v332
  %519 = vst [vmem:[%s2 + $0x110] sm:$0xff] %v337
  %520 = vst [vmem:[%s2 + $0x118] sm:$0xff] %v342
  %521 = vst [vmem:[%s2 + $0x120] sm:$0xff] %v347
  %522 = vst [vmem:[%s2 + $0x128] sm:$0xff] %v352
  %523 = vst [vmem:[%s2 + $0x130] sm:$0xff] %v357
  %524 = vst [vmem:[%s2 + $0x138] sm:$0xff] %v362
  %525 = vst [vmem:[%s2 + $0x140] sm:$0xff] %v367
  %526 = vst [vmem:[%s2 + $0x148] sm:$0xff] %v372
  %527 = vst [vmem:[%s2 + $0x150] sm:$0xff] %v377
  %528 = vst [vmem:[%s2 + $0x158] sm:$0xff] %v382
  %529 = vst [vmem:[%s2 + $0x160] sm:$0xff] %v387
  %530 = vst [vmem:[%s2 + $0x168] sm:$0xff] %v392
  %531 = vst [vmem:[%s2 + $0x170] sm:$0xff] %v397
  %532 = vst [vmem:[%s2 + $0x178] sm:$0xff] %v402
  %533 = vst [vmem:[%s2 + $0x180] sm:$0xff] %v407
  %534 = vst [vmem:[%s2 + $0x188] sm:$0xff] %v412
  %535 = vst [vmem:[%s2 + $0x190] sm:$0xff] %v417
  %536 = vst [vmem:[%s2 + $0x198] sm:$0xff] %v422
  %537 = vst [vmem:[%s2 + $0x1a0] sm:$0xff] %v427
  %538 = vst [vmem:[%s2 + $0x1a8] sm:$0xff] %v432
  %539 = vst [vmem:[%s2 + $0x1b0] sm:$0xff] %v437
  %540 = vst [vmem:[%s2 + $0x1b8] sm:$0xff] %v442
  %541 = vst [vmem:[%s2 + $0x1c0] sm:$0xff] %v447
  %542 = vst [vmem:[%s2 + $0x1c8] sm:$0xff] %v452
  %543 = vst [vmem:[%s2 + $0x1d0] sm:$0xff] %v457
  %544 = vst [vmem:[%s2 + $0x1d8] sm:$0xff] %v462
  %545 = vst [vmem:[%s2 + $0x1e0] sm:$0xff] %v467
  %546 = vst [vmem:[%s2 + $0x1e8] sm:$0xff] %v472
  %547 = vst [vmem:[%s2 + $0x1f0] sm:$0xff] %v477
  %548 = vst [vmem:[%s2 + $0x1f8] sm:$0xff] %v482
  %v549 = vld [vmem:[%s3] sm:$0xff]
  %v550 = vadd.f32 %v167, %v172
  %v551 = vadd.f32 %v550, %v177
  %v552 = vadd.f32 %v551, %v182
  %v553 = vadd.f32 %v552, %v187
  %v554 = vadd.f32 %v553, %v192
  %v555 = vadd.f32 %v554, %v197
  %v556 = vadd.f32 %v555, %v202
  %v557 = vadd.f32 %v556, %v207
  %v558 = vadd.f32 %v557, %v212
  %v559 = vadd.f32 %v558, %v217
  %v560 = vadd.f32 %v559, %v222
  %v561 = vadd.f32 %v560, %v227
  %v562 = vadd.f32 %v561, %v232
  %v563 = vadd.f32 %v562, %v237
  %v564 = vadd.f32 %v563, %v242
  %v565 = vadd.f32 %v564, %v247
  %v566 = vadd.f32 %v565, %v252
  %v567 = vadd.f32 %v566, %v257
  %v568 = vadd.f32 %v567, %v262
  %v569 = vadd.f32 %v568, %v267
  %v570 = vadd.f32 %v569, %v272
  %v571 = vadd.f32 %v570, %v277
  %v572 = vadd.f32 %v571, %v282
  %v573 = vadd.f32 %v572, %v287
  %v574 = vadd.f32 %v573, %v292
  %v575 = vadd.f32 %v574, %v297
  %v576 = vadd.f32 %v575, %v302
  %v577 = vadd.f32 %v576, %v307
  %v578 = vadd.f32 %v577, %v312
  %v579 = vadd.f32 %v578, %v317
  %v580 = vadd.f32 %v579, %v322
  %v581 = vadd.f32 %v580, %v327
  %v582 = vadd.f32 %v581, %v332
  %v583 = vadd.f32 %v582, %v337
  %v584 = vadd.f32 %v583, %v342
  %v585 = vadd.f32 %v584, %v347
  %v586 = vadd.f32 %v585, %v352
  %v587 = vadd.f32 %v586, %v357
  %v588 = vadd.f32 %v587, %v362
  %v589 = vadd.f32 %v588, %v367
  %v590 = vadd.f32 %v589, %v372
  %v591 = vadd.f32 %v590, %v377
  %v592 = vadd.f32 %v591, %v382
  %v593 = vadd.f32 %v592, %v387
  %v594 = vadd.f32 %v593, %v392
  %v595 = vadd.f32 %v594, %v397
  %v596 = vadd.f32 %v595, %v402
  %v597 = vadd.f32 %v596, %v407
  %v598 = vadd.f32 %v597, %v412
  %v599 = vadd.f32 %v598, %v417
  %v600 = vadd.f32 %v599, %v422
  %v601 = vadd.f32 %v600, %v427
  %v602 = vadd.f32 %v601, %v432
  %v603 = vadd.f32 %v602, %v437
  %v604 = vadd.f32 %v603, %v442
  %v605 = vadd.f32 %v604, %v447
  %v606 = vadd.f32 %v605, %v452
  %v607 = vadd.f32 %v606, %v457
  %v608 = vadd.f32 %v607, %v462
  %v609 = vadd.f32 %v608, %v467
  %v610 = vadd.f32 %v609, %v472
  %v611 = vadd.f32 %v610, %v477
  %v612 = vadd.f32 %v611, %v482
  %v613 = vadd.f32 %v549, %v612
  %614 = vst [vmem:[%s3] sm:$0xff] %v613
  %v615 = vld [vmem:[%s4] sm:$0xff]
  %v616 = vmul.f32 %v167, %v167
  %v617 = vmul.f32 %v172, %v172
  %v618 = vmul.f32 %v177, %v177
  %v619 = vmul.f32 %v182, %v182
  %v620 = vmul.f32 %v187, %v187
  %v621 = vmul.f32 %v192, %v192
  %v622 = vmul.f32 %v197, %v197
  %v623 = vmul.f32 %v202, %v202
  %v624 = vmul.f32 %v207, %v207
  %v625 = vmul.f32 %v212, %v212
  %v626 = vmul.f32 %v217, %v217
  %v627 = vmul.f32 %v222, %v222
  %v628 = vmul.f32 %v227, %v227
  %v629 = vmul.f32 %v232, %v232
  %v630 = vmul.f32 %v237, %v237
  %v631 = vmul.f32 %v242, %v242
  %v632 = vmul.f32 %v247, %v247
  %v633 = vmul.f32 %v252, %v252
  %v634 = vmul.f32 %v257, %v257
  %v635 = vmul.f32 %v262, %v262
  %v636 = vmul.f32 %v267, %v267
  %v637 = vmul.f32 %v272, %v272
  %v638 = vmul.f32 %v277, %v277
  %v639 = vmul.f32 %v282, %v282
  %v640 = vmul.f32 %v287, %v287
  %v641 = vmul.f32 %v292, %v292
  %v642 = vmul.f32 %v297, %v297
  %v643 = vmul.f32 %v302, %v302
  %v644 = vmul.f32 %v307, %v307
  %v645 = vmul.f32 %v312, %v312
  %v646 = vmul.f32 %v317, %v317
  %v647 = vmul.f32 %v322, %v322
  %v648 = vmul.f32 %v327, %v327
  %v649 = vmul.f32 %v332, %v332
  %v650 = vmul.f32 %v337, %v337
  %v651 = vmul.f32 %v342, %v342
  %v652 = vmul.f32 %v347, %v347
  %v653 = vmul.f32 %v352, %v352
  %v654 = vmul.f32 %v357, %v357
  %v655 = vmul.f32 %v362, %v362
  %v656 = vmul.f32 %v367, %v367
  %v657 = vmul.f32 %v372, %v372
  %v658 = vmul.f32 %v377, %v377
  %v659 = vmul.f32 %v382, %v382
  %v660 = vmul.f32 %v387, %v387
  %v661 = vmul.f32 %v392, %v392
  %v662 = vmul.f32 %v397, %v397
  %v663 = vmul.f32 %v402, %v402
  %v664 = vmul.f32 %v407, %v407
  %v665 = vmul.f32 %v412, %v412
  %v666 = vmul.f32 %v417, %v417
  %v667 = vmul.f32 %v422, %v422
  %v668 = vmul.f32 %v427, %v427
  %v669 = vmul.f32 %v432, %v432
  %v670 = vmul.f32 %v437, %v437
  %v671 = vmul.f32 %v442, %v442
  %v672 = vmul.f32 %v447, %v447
  %v673 = vmul.f32 %v452, %v452
  %v674 = vmul.f32 %v457, %v457
  %v675 = vmul.f32 %v462, %v462
  %v676 = vmul.f32 %v467, %v467
  %v677 = vmul.f32 %v472, %v472
  %v678 = vmul.f32 %v477, %v477
  %v679 = vmul.f32 %v482, %v482
  %v680 = vadd.f32 %v616, %v617
  %v681 = vadd.f32 %v680, %v618
  %v682 = vadd.f32 %v681, %v619
  %v683 = vadd.f32 %v682, %v620
  %v684 = vadd.f32 %v683, %v621
  %v685 = vadd.f32 %v684, %v622
  %v686 = vadd.f32 %v685, %v623
  %v687 = vadd.f32 %v686, %v624
  %v688 = vadd.f32 %v687, %v625
  %v689 = vadd.f32 %v688, %v626
  %v690 = vadd.f32 %v689, %v627
  %v691 = vadd.f32 %v690, %v628
  %v692 = vadd.f32 %v691, %v629
  %v693 = vadd.f32 %v692, %v630
  %v694 = vadd.f32 %v693, %v631
  %v695 = vadd.f32 %v694, %v632
  %v696 = vadd.f32 %v695, %v633
  %v697 = vadd.f32 %v696, %v634
  %v698 = vadd.f32 %v697, %v635
  %v699 = vadd.f32 %v698, %v636
  %v700 = vadd.f32 %v699, %v637
  %v701 = vadd.f32 %v700, %v638
  %v702 = vadd.f32 %v701, %v639
  %v703 = vadd.f32 %v702, %v640
  %v704 = vadd.f32 %v703, %v641
  %v705 = vadd.f32 %v704, %v642
  %v706 = vadd.f32 %v705, %v643
  %v707 = vadd.f32 %v706, %v644
  %v708 = vadd.f32 %v707, %v645
  %v709 = vadd.f32 %v708, %v646
  %v710 = vadd.f32 %v709, %v647
  %v711 = vadd.f32 %v710, %v648
  %v712 = vadd.f32 %v711, %v649
  %v713 = vadd.f32 %v712, %v650
  %v714 = vadd.f32 %v713, %v651
  %v715 = vadd.f32 %v714, %v652
  %v716 = vadd.f32 %v715, %v653
  %v717 = vadd.f32 %v716, %v654
  %v718 = vadd.f32 %v717, %v655
  %v719 = vadd.f32 %v718, %v656
  %v720 = vadd.f32 %v719, %v657
  %v721 = vadd.f32 %v720, %v658
  %v722 = vadd.f32 %v721, %v659
  %v723 = vadd.f32 %v722, %v660
  %v724 = vadd.f32 %v723, %v661
  %v725 = vadd.f32 %v724, %v662
  %v726 = vadd.f32 %v725, %v663
  %v727 = vadd.f32 %v726, %v664
  %v728 = vadd.f32 %v727, %v665
  %v729 = vadd.f32 %v728, %v666
  %v730 = vadd.f32 %v729, %v667
  %v731 = vadd.f32 %v730, %v668
  %v732 = vadd.f32 %v731, %v669
  %v733 = vadd.f32 %v732, %v670
  %v734 = vadd.f32 %v733, %v671
  %v735 = vadd.f32 %v734, %v672
  %v736 = vadd.f32 %v735, %v673
  %v737 = vadd.f32 %v736, %v674
  %v738 = vadd.f32 %v737, %v675
  %v739 = vadd.f32 %v738, %v676
  %v740 = vadd.f32 %v739, %v677
  %v741 = vadd.f32 %v740, %v678
  %v742 = vadd.f32 %v741, %v679
  %v743 = vadd.f32 %v615, %v742
  %744 = vst [vmem:[%s4] sm:$0xff] %v743
  // Predicated region
  $region14: #{res_block_forward.10} parent=0 // pred_check
    _
  $region15: #{res_block_forward.10} parent=0 // pred_check_branch
    %746 = sbr.rel (0) target = $region17
  $region16: #{res_block_forward.10} parent=0 // pred_region
    _
  $region17: #{res_block_forward.10} parent=0 // pred_fallthru
    _
  // Predicated region
  $region18: #{res_block_forward.10} parent=0 // pred_check
    _
  $region19: #{res_block_forward.10} parent=0 // pred_check_branch
    %748 = sbr.rel (0) target = $region21
  $region20: #{res_block_forward.10} parent=0 // pred_region
    _
  $region21: #{res_block_forward.10} parent=0 // pred_fallthru
    _
  // Predicated region
  $region22: #{res_block_forward.10} parent=0 // pred_check
    _
  $region23: #{res_block_forward.10} parent=0 // pred_check_branch
    %750 = sbr.rel (0) target = $region25
  $region24: #{res_block_forward.10} parent=0 // pred_region
    _
  $region25: #{res_block_forward.10} parent=0 // pred_fallthru
    _
  // Predicated region
  $region26: #{res_block_forward.10} parent=0 // pred_check
    _
  $region27: #{res_block_forward.10} parent=0 // pred_check_branch
    %752 = sbr.rel (0) target = $region29
  $region28: #{res_block_forward.10} parent=0 // pred_region
    _
  $region29: #{res_block_forward.10} parent=0 // pred_fallthru
    _
  // Predicated region
  $region30: #{res_block_forward.10} parent=0 // pred_check
    _
  $region31: #{res_block_forward.10} parent=0 // pred_check_branch
    %754 = sbr.rel (0) target = $region33
  $region32: #{res_block_forward.10} parent=0 // pred_region
    _
  $region33: #{res_block_forward.10} parent=0 // pred_fallthru
    _
  // Predicated region
  $region34: #{res_block_forward.10} parent=0 // pred_check
    _
  $region35: #{res_block_forward.10} parent=0 // pred_check_branch
    %756 = sbr.rel (0) target = $region37
  $region36: #{res_block_forward.10} parent=0 // pred_region
    _
  $region37: #{res_block_forward.10} parent=0 // pred_fallthru
    _

// kernel: res_block_forward.11
$region0: #{res_block_forward.11}
  #allocation0 [shape = 'u32[]', space=smem, size = 0x4, offset = 0x4, fixed_abs, tag = 'smem constant byte address 0x4 - core index']
  #allocation1 [shape = 'u32[144,128]{1,0:T(1,128)}', space=vmem, size = 0x12000, scoped, tag = 'internal scratch']
  %s0 = inlined_call_operand.vmem [shape: f32[512,128], index: 0, kind: input, shape index: {}]
  %s1 = inlined_call_operand.vmem [shape: f32[1,128], index: 1, kind: input, shape index: {}]
  %s2 = inlined_call_operand.vmem [shape: f32[1,128], index: 2, kind: input, shape index: {}]
  %s3 = inlined_call_operand.vmem [shape: f32[512,128], index: 3, kind: output, shape index: {}]
  %s4 = sld [smem:[#allocation0]]
  $region22: #{res_block_forward.11} parent=0
    _
  %s6 = ssub.s32 1, %s4
  %s7 = scalar_select 0, %s6, %s4
  // Predicated region
  $region2: #{res_block_forward.11} parent=0 // pred_check
    _
  $region3: #{res_block_forward.11} parent=0 // pred_check_branch
    %9 = sbr.rel (0) target = $region5
  $region4: #{res_block_forward.11} parent=0 // pred_region
    _
  $region5: #{res_block_forward.11} parent=0 // pred_fallthru
    _
  // Predicated region
  $region6: #{res_block_forward.11} parent=0 // pred_check
    _
  $region7: #{res_block_forward.11} parent=0 // pred_check_branch
    %11 = sbr.rel (0) target = $region9
  $region8: #{res_block_forward.11} parent=0 // pred_region
    _
  $region9: #{res_block_forward.11} parent=0 // pred_fallthru
    _
  // Predicated region
  $region10: #{res_block_forward.11} parent=0 // pred_check
    _
  $region11: #{res_block_forward.11} parent=0 // pred_check_branch
    %13 = sbr.rel (0) target = $region13
  $region12: #{res_block_forward.11} parent=0 // pred_region
    _
  $region13: #{res_block_forward.11} parent=0 // pred_fallthru
    _
  %v14 = vld [vmem:[%s0] sm:$0xff]
  %v15 = vld [vmem:[%s0 + $0x8] sm:$0xff]
  %v16 = vld [vmem:[%s0 + $0x10] sm:$0xff]
  %v17 = vld [vmem:[%s0 + $0x18] sm:$0xff]
  %v18 = vld [vmem:[%s0 + $0x20] sm:$0xff]
  %v19 = vld [vmem:[%s0 + $0x28] sm:$0xff]
  %v20 = vld [vmem:[%s0 + $0x30] sm:$0xff]
  %v21 = vld [vmem:[%s0 + $0x38] sm:$0xff]
  %v22 = vld [vmem:[%s0 + $0x40] sm:$0xff]
  %v23 = vld [vmem:[%s0 + $0x48] sm:$0xff]
  %v24 = vld [vmem:[%s0 + $0x50] sm:$0xff]
  %v25 = vld [vmem:[%s0 + $0x58] sm:$0xff]
  %v26 = vld [vmem:[%s0 + $0x60] sm:$0xff]
  %v27 = vld [vmem:[%s0 + $0x68] sm:$0xff]
  %v28 = vld [vmem:[%s0 + $0x70] sm:$0xff]
  %v29 = vld [vmem:[%s0 + $0x78] sm:$0xff]
  %v30 = vld [vmem:[%s0 + $0x80] sm:$0xff]
  %v31 = vld [vmem:[%s0 + $0x88] sm:$0xff]
  %v32 = vld [vmem:[%s0 + $0x90] sm:$0xff]
  %v33 = vld [vmem:[%s0 + $0x98] sm:$0xff]
  %v34 = vld [vmem:[%s0 + $0xa0] sm:$0xff]
  %v35 = vld [vmem:[%s0 + $0xa8] sm:$0xff]
  %v36 = vld [vmem:[%s0 + $0xb0] sm:$0xff]
  %v37 = vld [vmem:[%s0 + $0xb8] sm:$0xff]
  %v38 = vld [vmem:[%s0 + $0xc0] sm:$0xff]
  %v39 = vld [vmem:[%s0 + $0xc8] sm:$0xff]
  %v40 = vld [vmem:[%s0 + $0xd0] sm:$0xff]
  %v41 = vld [vmem:[%s0 + $0xd8] sm:$0xff]
  %v42 = vld [vmem:[%s0 + $0xe0] sm:$0xff]
  %v43 = vld [vmem:[%s0 + $0xe8] sm:$0xff]
  %v44 = vld [vmem:[%s0 + $0xf0] sm:$0xff]
  %v45 = vld [vmem:[%s0 + $0xf8] sm:$0xff]
  %v46 = vld [vmem:[%s0 + $0x100] sm:$0xff]
  %v47 = vld [vmem:[%s0 + $0x108] sm:$0xff]
  %v48 = vld [vmem:[%s0 + $0x110] sm:$0xff]
  %v49 = vld [vmem:[%s0 + $0x118] sm:$0xff]
  %v50 = vld [vmem:[%s0 + $0x120] sm:$0xff]
  %v51 = vld [vmem:[%s0 + $0x128] sm:$0xff]
  %v52 = vld [vmem:[%s0 + $0x130] sm:$0xff]
  %v53 = vld [vmem:[%s0 + $0x138] sm:$0xff]
  %v54 = vld [vmem:[%s0 + $0x140] sm:$0xff]
  %v55 = vld [vmem:[%s0 + $0x148] sm:$0xff]
  %v56 = vld [vmem:[%s0 + $0x150] sm:$0xff]
  %v57 = vld [vmem:[%s0 + $0x158] sm:$0xff]
  %v58 = vld [vmem:[%s0 + $0x160] sm:$0xff]
  %v59 = vld [vmem:[%s0 + $0x168] sm:$0xff]
  %v60 = vld [vmem:[%s0 + $0x170] sm:$0xff]
  %v61 = vld [vmem:[%s0 + $0x178] sm:$0xff]
  %v62 = vld [vmem:[%s0 + $0x180] sm:$0xff]
  %v63 = vld [vmem:[%s0 + $0x188] sm:$0xff]
  %v64 = vld [vmem:[%s0 + $0x190] sm:$0xff]
  %v65 = vld [vmem:[%s0 + $0x198] sm:$0xff]
  %v66 = vld [vmem:[%s0 + $0x1a0] sm:$0xff]
  %v67 = vld [vmem:[%s0 + $0x1a8] sm:$0xff]
  %v68 = vld [vmem:[%s0 + $0x1b0] sm:$0xff]
  %v69 = vld [vmem:[%s0 + $0x1b8] sm:$0xff]
  %v70 = vld [vmem:[%s0 + $0x1c0] sm:$0xff]
  %v71 = vld [vmem:[%s0 + $0x1c8] sm:$0xff]
  %v72 = vld [vmem:[%s0 + $0x1d0] sm:$0xff]
  %v73 = vld [vmem:[%s0 + $0x1d8] sm:$0xff]
  %v74 = vld [vmem:[%s0 + $0x1e0] sm:$0xff]
  %v75 = vld [vmem:[%s0 + $0x1e8] sm:$0xff]
  %v76 = vld [vmem:[%s0 + $0x1f0] sm:$0xff]
  %v77 = vld [vmem:[%s0 + $0x1f8] sm:$0xff]
  %v78 = vld [vmem:[%s1] sm:$0x1]
  %v80 = vlaneseq
  %v81 = vshrl.u32 %v80, 7
  %v82 = vsub.s32 0, %v81
  %v83 = vrot.slane %v78, %v82
  %v85 = vmul.f32 %v14, %v83
  %v86 = vmul.f32 %v15, %v83
  %v87 = vmul.f32 %v16, %v83
  %v88 = vmul.f32 %v17, %v83
  %v89 = vmul.f32 %v18, %v83
  %v90 = vmul.f32 %v19, %v83
  %v91 = vmul.f32 %v20, %v83
  %v92 = vmul.f32 %v21, %v83
  %v93 = vmul.f32 %v22, %v83
  %v94 = vmul.f32 %v23, %v83
  %v95 = vmul.f32 %v24, %v83
  %v96 = vmul.f32 %v25, %v83
  %v97 = vmul.f32 %v26, %v83
  %v98 = vmul.f32 %v27, %v83
  %v99 = vmul.f32 %v28, %v83
  %v100 = vmul.f32 %v29, %v83
  %v101 = vmul.f32 %v30, %v83
  %v102 = vmul.f32 %v31, %v83
  %v103 = vmul.f32 %v32, %v83
  %v104 = vmul.f32 %v33, %v83
  %v105 = vmul.f32 %v34, %v83
  %v106 = vmul.f32 %v35, %v83
  %v107 = vmul.f32 %v36, %v83
  %v108 = vmul.f32 %v37, %v83
  %v109 = vmul.f32 %v38, %v83
  %v110 = vmul.f32 %v39, %v83
  %v111 = vmul.f32 %v40, %v83
  %v112 = vmul.f32 %v41, %v83
  %v113 = vmul.f32 %v42, %v83
  %v114 = vmul.f32 %v43, %v83
  %v115 = vmul.f32 %v44, %v83
  %v116 = vmul.f32 %v45, %v83
  %v117 = vmul.f32 %v46, %v83
  %v118 = vmul.f32 %v47, %v83
  %v119 = vmul.f32 %v48, %v83
  %v120 = vmul.f32 %v49, %v83
  %v121 = vmul.f32 %v50, %v83
  %v122 = vmul.f32 %v51, %v83
  %v123 = vmul.f32 %v52, %v83
  %v124 = vmul.f32 %v53, %v83
  %v125 = vmul.f32 %v54, %v83
  %v126 = vmul.f32 %v55, %v83
  %v127 = vmul.f32 %v56, %v83
  %v128 = vmul.f32 %v57, %v83
  %v129 = vmul.f32 %v58, %v83
  %v130 = vmul.f32 %v59, %v83
  %v131 = vmul.f32 %v60, %v83
  %v132 = vmul.f32 %v61, %v83
  %v133 = vmul.f32 %v62, %v83
  %v134 = vmul.f32 %v63, %v83
  %v135 = vmul.f32 %v64, %v83
  %v136 = vmul.f32 %v65, %v83
  %v137 = vmul.f32 %v66, %v83
  %v138 = vmul.f32 %v67, %v83
  %v139 = vmul.f32 %v68, %v83
  %v140 = vmul.f32 %v69, %v83
  %v141 = vmul.f32 %v70, %v83
  %v142 = vmul.f32 %v71, %v83
  %v143 = vmul.f32 %v72, %v83
  %v144 = vmul.f32 %v73, %v83
  %v145 = vmul.f32 %v74, %v83
  %v146 = vmul.f32 %v75, %v83
  %v147 = vmul.f32 %v76, %v83
  %v148 = vmul.f32 %v77, %v83
  %v149 = vld [vmem:[%s2] sm:$0x1]
  %v151 = vlaneseq
  %v152 = vshrl.u32 %v151, 7
  %v153 = vsub.s32 0, %v152
  %v154 = vrot.slane %v149, %v153
  %v156 = vadd.f32 %v85, %v154
  %v157 = vadd.f32 %v86, %v154
  %v158 = vadd.f32 %v87, %v154
  %v159 = vadd.f32 %v88, %v154
  %v160 = vadd.f32 %v89, %v154
  %v161 = vadd.f32 %v90, %v154
  %v162 = vadd.f32 %v91, %v154
  %v163 = vadd.f32 %v92, %v154
  %v164 = vadd.f32 %v93, %v154
  %v165 = vadd.f32 %v94, %v154
  %v166 = vadd.f32 %v95, %v154
  %v167 = vadd.f32 %v96, %v154
  %v168 = vadd.f32 %v97, %v154
  %v169 = vadd.f32 %v98, %v154
  %v170 = vadd.f32 %v99, %v154
  %v171 = vadd.f32 %v100, %v154
  %v172 = vadd.f32 %v101, %v154
  %v173 = vadd.f32 %v102, %v154
  %v174 = vadd.f32 %v103, %v154
  %v175 = vadd.f32 %v104, %v154
  %v176 = vadd.f32 %v105, %v154
  %v177 = vadd.f32 %v106, %v154
  %v178 = vadd.f32 %v107, %v154
  %v179 = vadd.f32 %v108, %v154
  %v180 = vadd.f32 %v109, %v154
  %v181 = vadd.f32 %v110, %v154
  %v182 = vadd.f32 %v111, %v154
  %v183 = vadd.f32 %v112, %v154
  %v184 = vadd.f32 %v113, %v154
  %v185 = vadd.f32 %v114, %v154
  %v186 = vadd.f32 %v115, %v154
  %v187 = vadd.f32 %v116, %v154
  %v188 = vadd.f32 %v117, %v154
  %v189 = vadd.f32 %v118, %v154
  %v190 = vadd.f32 %v119, %v154
  %v191 = vadd.f32 %v120, %v154
  %v192 = vadd.f32 %v121, %v154
  %v193 = vadd.f32 %v122, %v154
  %v194 = vadd.f32 %v123, %v154
  %v195 = vadd.f32 %v124, %v154
  %v196 = vadd.f32 %v125, %v154
  %v197 = vadd.f32 %v126, %v154
  %v198 = vadd.f32 %v127, %v154
  %v199 = vadd.f32 %v128, %v154
  %v200 = vadd.f32 %v129, %v154
  %v201 = vadd.f32 %v130, %v154
  %v202 = vadd.f32 %v131, %v154
  %v203 = vadd.f32 %v132, %v154
  %v204 = vadd.f32 %v133, %v154
  %v205 = vadd.f32 %v134, %v154
  %v206 = vadd.f32 %v135, %v154
  %v207 = vadd.f32 %v136, %v154
  %v208 = vadd.f32 %v137, %v154
  %v209 = vadd.f32 %v138, %v154
  %v210 = vadd.f32 %v139, %v154
  %v211 = vadd.f32 %v140, %v154
  %v212 = vadd.f32 %v141, %v154
  %v213 = vadd.f32 %v142, %v154
  %v214 = vadd.f32 %v143, %v154
  %v215 = vadd.f32 %v144, %v154
  %v216 = vadd.f32 %v145, %v154
  %v217 = vadd.f32 %v146, %v154
  %v218 = vadd.f32 %v147, %v154
  %v219 = vadd.f32 %v148, %v154
  %vm220 = vcmp.ge.f32.partialorder %v156, 0.0
  %vm221 = vcmp.ge.f32.partialorder %v157, 0.0
  %vm222 = vcmp.ge.f32.partialorder %v158, 0.0
  %vm223 = vcmp.ge.f32.partialorder %v159, 0.0
  %vm224 = vcmp.ge.f32.partialorder %v160, 0.0
  %vm225 = vcmp.ge.f32.partialorder %v161, 0.0
  %vm226 = vcmp.ge.f32.partialorder %v162, 0.0
  %vm227 = vcmp.ge.f32.partialorder %v163, 0.0
  %vm228 = vcmp.ge.f32.partialorder %v164, 0.0
  %vm229 = vcmp.ge.f32.partialorder %v165, 0.0
  %vm230 = vcmp.ge.f32.partialorder %v166, 0.0
  %vm231 = vcmp.ge.f32.partialorder %v167, 0.0
  %vm232 = vcmp.ge.f32.partialorder %v168, 0.0
  %vm233 = vcmp.ge.f32.partialorder %v169, 0.0
  %vm234 = vcmp.ge.f32.partialorder %v170, 0.0
  %vm235 = vcmp.ge.f32.partialorder %v171, 0.0
  %vm236 = vcmp.ge.f32.partialorder %v172, 0.0
  %vm237 = vcmp.ge.f32.partialorder %v173, 0.0
  %vm238 = vcmp.ge.f32.partialorder %v174, 0.0
  %vm239 = vcmp.ge.f32.partialorder %v175, 0.0
  %vm240 = vcmp.ge.f32.partialorder %v176, 0.0
  %vm241 = vcmp.ge.f32.partialorder %v177, 0.0
  %vm242 = vcmp.ge.f32.partialorder %v178, 0.0
  %vm243 = vcmp.ge.f32.partialorder %v179, 0.0
  %vm244 = vcmp.ge.f32.partialorder %v180, 0.0
  %vm245 = vcmp.ge.f32.partialorder %v181, 0.0
  %vm246 = vcmp.ge.f32.partialorder %v182, 0.0
  %vm247 = vcmp.ge.f32.partialorder %v183, 0.0
  %vm248 = vcmp.ge.f32.partialorder %v184, 0.0
  %vm249 = vcmp.ge.f32.partialorder %v185, 0.0
  %vm250 = vcmp.ge.f32.partialorder %v186, 0.0
  %vm251 = vcmp.ge.f32.partialorder %v187, 0.0
  %vm252 = vcmp.ge.f32.partialorder %v188, 0.0
  %vm253 = vcmp.ge.f32.partialorder %v189, 0.0
  %vm254 = vcmp.ge.f32.partialorder %v190, 0.0
  %vm255 = vcmp.ge.f32.partialorder %v191, 0.0
  %vm256 = vcmp.ge.f32.partialorder %v192, 0.0
  %vm257 = vcmp.ge.f32.partialorder %v193, 0.0
  %vm258 = vcmp.ge.f32.partialorder %v194, 0.0
  %vm259 = vcmp.ge.f32.partialorder %v195, 0.0
  %vm260 = vcmp.ge.f32.partialorder %v196, 0.0
  %vm261 = vcmp.ge.f32.partialorder %v197, 0.0
  %vm262 = vcmp.ge.f32.partialorder %v198, 0.0
  %vm263 = vcmp.ge.f32.partialorder %v199, 0.0
  %vm264 = vcmp.ge.f32.partialorder %v200, 0.0
  %vm265 = vcmp.ge.f32.partialorder %v201, 0.0
  %vm266 = vcmp.ge.f32.partialorder %v202, 0.0
  %vm267 = vcmp.ge.f32.partialorder %v203, 0.0
  %vm268 = vcmp.ge.f32.partialorder %v204, 0.0
  %vm269 = vcmp.ge.f32.partialorder %v205, 0.0
  %vm270 = vcmp.ge.f32.partialorder %v206, 0.0
  %vm271 = vcmp.ge.f32.partialorder %v207, 0.0
  %vm272 = vcmp.ge.f32.partialorder %v208, 0.0
  %vm273 = vcmp.ge.f32.partialorder %v209, 0.0
  %vm274 = vcmp.ge.f32.partialorder %v210, 0.0
  %vm275 = vcmp.ge.f32.partialorder %v211, 0.0
  %vm276 = vcmp.ge.f32.partialorder %v212, 0.0
  %vm277 = vcmp.ge.f32.partialorder %v213, 0.0
  %vm278 = vcmp.ge.f32.partialorder %v214, 0.0
  %vm279 = vcmp.ge.f32.partialorder %v215, 0.0
  %vm280 = vcmp.ge.f32.partialorder %v216, 0.0
  %vm281 = vcmp.ge.f32.partialorder %v217, 0.0
  %vm282 = vcmp.ge.f32.partialorder %v218, 0.0
  %vm283 = vcmp.ge.f32.partialorder %v219, 0.0
  %v284 = vmul.f32 %v156, 0.01
  %v285 = vmul.f32 %v157, 0.01
  %v286 = vmul.f32 %v158, 0.01
  %v287 = vmul.f32 %v159, 0.01
  %v288 = vmul.f32 %v160, 0.01
  %v289 = vmul.f32 %v161, 0.01
  %v290 = vmul.f32 %v162, 0.01
  %v291 = vmul.f32 %v163, 0.01
  %v292 = vmul.f32 %v164, 0.01
  %v293 = vmul.f32 %v165, 0.01
  %v294 = vmul.f32 %v166, 0.01
  %v295 = vmul.f32 %v167, 0.01
  %v296 = vmul.f32 %v168, 0.01
  %v297 = vmul.f32 %v169, 0.01
  %v298 = vmul.f32 %v170, 0.01
  %v299 = vmul.f32 %v171, 0.01
  %v300 = vmul.f32 %v172, 0.01
  %v301 = vmul.f32 %v173, 0.01
  %v302 = vmul.f32 %v174, 0.01
  %v303 = vmul.f32 %v175, 0.01
  %v304 = vmul.f32 %v176, 0.01
  %v305 = vmul.f32 %v177, 0.01
  %v306 = vmul.f32 %v178, 0.01
  %v307 = vmul.f32 %v179, 0.01
  %v308 = vmul.f32 %v180, 0.01
  %v309 = vmul.f32 %v181, 0.01
  %v310 = vmul.f32 %v182, 0.01
  %v311 = vmul.f32 %v183, 0.01
  %v312 = vmul.f32 %v184, 0.01
  %v313 = vmul.f32 %v185, 0.01
  %v314 = vmul.f32 %v186, 0.01
  %v315 = vmul.f32 %v187, 0.01
  %v316 = vmul.f32 %v188, 0.01
  %v317 = vmul.f32 %v189, 0.01
  %v318 = vmul.f32 %v190, 0.01
  %v319 = vmul.f32 %v191, 0.01
  %v320 = vmul.f32 %v192, 0.01
  %v321 = vmul.f32 %v193, 0.01
  %v322 = vmul.f32 %v194, 0.01
  %v323 = vmul.f32 %v195, 0.01
  %v324 = vmul.f32 %v196, 0.01
  %v325 = vmul.f32 %v197, 0.01
  %v326 = vmul.f32 %v198, 0.01
  %v327 = vmul.f32 %v199, 0.01
  %v328 = vmul.f32 %v200, 0.01
  %v329 = vmul.f32 %v201, 0.01
  %v330 = vmul.f32 %v202, 0.01
  %v331 = vmul.f32 %v203, 0.01
  %v332 = vmul.f32 %v204, 0.01
  %v333 = vmul.f32 %v205, 0.01
  %v334 = vmul.f32 %v206, 0.01
  %v335 = vmul.f32 %v207, 0.01
  %v336 = vmul.f32 %v208, 0.01
  %v337 = vmul.f32 %v209, 0.01
  %v338 = vmul.f32 %v210, 0.01
  %v339 = vmul.f32 %v211, 0.01
  %v340 = vmul.f32 %v212, 0.01
  %v341 = vmul.f32 %v213, 0.01
  %v342 = vmul.f32 %v214, 0.01
  %v343 = vmul.f32 %v215, 0.01
  %v344 = vmul.f32 %v216, 0.01
  %v345 = vmul.f32 %v217, 0.01
  %v346 = vmul.f32 %v218, 0.01
  %v347 = vmul.f32 %v219, 0.01
  %v348 = vsel %vm220, %v156, %v284
  %v349 = vsel %vm221, %v157, %v285
  %v350 = vsel %vm222, %v158, %v286
  %v351 = vsel %vm223, %v159, %v287
  %v352 = vsel %vm224, %v160, %v288
  %v353 = vsel %vm225, %v161, %v289
  %v354 = vsel %vm226, %v162, %v290
  %v355 = vsel %vm227, %v163, %v291
  %v356 = vsel %vm228, %v164, %v292
  %v357 = vsel %vm229, %v165, %v293
  %v358 = vsel %vm230, %v166, %v294
  %v359 = vsel %vm231, %v167, %v295
  %v360 = vsel %vm232, %v168, %v296
  %v361 = vsel %vm233, %v169, %v297
  %v362 = vsel %vm234, %v170, %v298
  %v363 = vsel %vm235, %v171, %v299
  %v364 = vsel %vm236, %v172, %v300
  %v365 = vsel %vm237, %v173, %v301
  %v366 = vsel %vm238, %v174, %v302
  %v367 = vsel %vm239, %v175, %v303
  %v368 = vsel %vm240, %v176, %v304
  %v369 = vsel %vm241, %v177, %v305
  %v370 = vsel %vm242, %v178, %v306
  %v371 = vsel %vm243, %v179, %v307
  %v372 = vsel %vm244, %v180, %v308
  %v373 = vsel %vm245, %v181, %v309
  %v374 = vsel %vm246, %v182, %v310
  %v375 = vsel %vm247, %v183, %v311
  %v376 = vsel %vm248, %v184, %v312
  %v377 = vsel %vm249, %v185, %v313
  %v378 = vsel %vm250, %v186, %v314
  %v379 = vsel %vm251, %v187, %v315
  %v380 = vsel %vm252, %v188, %v316
  %v381 = vsel %vm253, %v189, %v317
  %v382 = vsel %vm254, %v190, %v318
  %v383 = vsel %vm255, %v191, %v319
  %v384 = vsel %vm256, %v192, %v320
  %v385 = vsel %vm257, %v193, %v321
  %v386 = vsel %vm258, %v194, %v322
  %v387 = vsel %vm259, %v195, %v323
  %v388 = vsel %vm260, %v196, %v324
  %v389 = vsel %vm261, %v197, %v325
  %v390 = vsel %vm262, %v198, %v326
  %v391 = vsel %vm263, %v199, %v327
  %v392 = vsel %vm264, %v200, %v328
  %v393 = vsel %vm265, %v201, %v329
  %v394 = vsel %vm266, %v202, %v330
  %v395 = vsel %vm267, %v203, %v331
  %v396 = vsel %vm268, %v204, %v332
  %v397 = vsel %vm269, %v205, %v333
  %v398 = vsel %vm270, %v206, %v334
  %v399 = vsel %vm271, %v207, %v335
  %v400 = vsel %vm272, %v208, %v336
  %v401 = vsel %vm273, %v209, %v337
  %v402 = vsel %vm274, %v210, %v338
  %v403 = vsel %vm275, %v211, %v339
  %v404 = vsel %vm276, %v212, %v340
  %v405 = vsel %vm277, %v213, %v341
  %v406 = vsel %vm278, %v214, %v342
  %v407 = vsel %vm279, %v215, %v343
  %v408 = vsel %vm280, %v216, %v344
  %v409 = vsel %vm281, %v217, %v345
  %v410 = vsel %vm282, %v218, %v346
  %v411 = vsel %vm283, %v219, %v347
  %412 = vst [vmem:[%s3] sm:$0xff] %v348
  %413 = vst [vmem:[%s3 + $0x8] sm:$0xff] %v349
  %414 = vst [vmem:[%s3 + $0x10] sm:$0xff] %v350
  %415 = vst [vmem:[%s3 + $0x18] sm:$0xff] %v351
  %416 = vst [vmem:[%s3 + $0x20] sm:$0xff] %v352
  %417 = vst [vmem:[%s3 + $0x28] sm:$0xff] %v353
  %418 = vst [vmem:[%s3 + $0x30] sm:$0xff] %v354
  %419 = vst [vmem:[%s3 + $0x38] sm:$0xff] %v355
  %420 = vst [vmem:[%s3 + $0x40] sm:$0xff] %v356
  %421 = vst [vmem:[%s3 + $0x48] sm:$0xff] %v357
  %422 = vst [vmem:[%s3 + $0x50] sm:$0xff] %v358
  %423 = vst [vmem:[%s3 + $0x58] sm:$0xff] %v359
  %424 = vst [vmem:[%s3 + $0x60] sm:$0xff] %v360
  %425 = vst [vmem:[%s3 + $0x68] sm:$0xff] %v361
  %426 = vst [vmem:[%s3 + $0x70] sm:$0xff] %v362
  %427 = vst [vmem:[%s3 + $0x78] sm:$0xff] %v363
  %428 = vst [vmem:[%s3 + $0x80] sm:$0xff] %v364
  %429 = vst [vmem:[%s3 + $0x88] sm:$0xff] %v365
  %430 = vst [vmem:[%s3 + $0x90] sm:$0xff] %v366
  %431 = vst [vmem:[%s3 + $0x98] sm:$0xff] %v367
  %432 = vst [vmem:[%s3 + $0xa0] sm:$0xff] %v368
  %433 = vst [vmem:[%s3 + $0xa8] sm:$0xff] %v369
  %434 = vst [vmem:[%s3 + $0xb0] sm:$0xff] %v370
  %435 = vst [vmem:[%s3 + $0xb8] sm:$0xff] %v371
  %436 = vst [vmem:[%s3 + $0xc0] sm:$0xff] %v372
  %437 = vst [vmem:[%s3 + $0xc8] sm:$0xff] %v373
  %438 = vst [vmem:[%s3 + $0xd0] sm:$0xff] %v374
  %439 = vst [vmem:[%s3 + $0xd8] sm:$0xff] %v375
  %440 = vst [vmem:[%s3 + $0xe0] sm:$0xff] %v376
  %441 = vst [vmem:[%s3 + $0xe8] sm:$0xff] %v377
  %442 = vst [vmem:[%s3 + $0xf0] sm:$0xff] %v378
  %443 = vst [vmem:[%s3 + $0xf8] sm:$0xff] %v379
  %444 = vst [vmem:[%s3 + $0x100] sm:$0xff] %v380
  %445 = vst [vmem:[%s3 + $0x108] sm:$0xff] %v381
  %446 = vst [vmem:[%s3 + $0x110] sm:$0xff] %v382
  %447 = vst [vmem:[%s3 + $0x118] sm:$0xff] %v383
  %448 = vst [vmem:[%s3 + $0x120] sm:$0xff] %v384
  %449 = vst [vmem:[%s3 + $0x128] sm:$0xff] %v385
  %450 = vst [vmem:[%s3 + $0x130] sm:$0xff] %v386
  %451 = vst [vmem:[%s3 + $0x138] sm:$0xff] %v387
  %452 = vst [vmem:[%s3 + $0x140] sm:$0xff] %v388
  %453 = vst [vmem:[%s3 + $0x148] sm:$0xff] %v389
  %454 = vst [vmem:[%s3 + $0x150] sm:$0xff] %v390
  %455 = vst [vmem:[%s3 + $0x158] sm:$0xff] %v391
  %456 = vst [vmem:[%s3 + $0x160] sm:$0xff] %v392
  %457 = vst [vmem:[%s3 + $0x168] sm:$0xff] %v393
  %458 = vst [vmem:[%s3 + $0x170] sm:$0xff] %v394
  %459 = vst [vmem:[%s3 + $0x178] sm:$0xff] %v395
  %460 = vst [vmem:[%s3 + $0x180] sm:$0xff] %v396
  %461 = vst [vmem:[%s3 + $0x188] sm:$0xff] %v397
  %462 = vst [vmem:[%s3 + $0x190] sm:$0xff] %v398
  %463 = vst [vmem:[%s3 + $0x198] sm:$0xff] %v399
  %464 = vst [vmem:[%s3 + $0x1a0] sm:$0xff] %v400
  %465 = vst [vmem:[%s3 + $0x1a8] sm:$0xff] %v401
  %466 = vst [vmem:[%s3 + $0x1b0] sm:$0xff] %v402
  %467 = vst [vmem:[%s3 + $0x1b8] sm:$0xff] %v403
  %468 = vst [vmem:[%s3 + $0x1c0] sm:$0xff] %v404
  %469 = vst [vmem:[%s3 + $0x1c8] sm:$0xff] %v405
  %470 = vst [vmem:[%s3 + $0x1d0] sm:$0xff] %v406
  %471 = vst [vmem:[%s3 + $0x1d8] sm:$0xff] %v407
  %472 = vst [vmem:[%s3 + $0x1e0] sm:$0xff] %v408
  %473 = vst [vmem:[%s3 + $0x1e8] sm:$0xff] %v409
  %474 = vst [vmem:[%s3 + $0x1f0] sm:$0xff] %v410
  %475 = vst [vmem:[%s3 + $0x1f8] sm:$0xff] %v411
  // Predicated region
  $region14: #{res_block_forward.11} parent=0 // pred_check
    _
  $region15: #{res_block_forward.11} parent=0 // pred_check_branch
    %477 = sbr.rel (0) target = $region17
  $region16: #{res_block_forward.11} parent=0 // pred_region
    _
  $region17: #{res_block_forward.11} parent=0 // pred_fallthru
    _
  // Predicated region
  $region18: #{res_block_forward.11} parent=0 // pred_check
    _
  $region19: #{res_block_forward.11} parent=0 // pred_check_branch
    %479 = sbr.rel (0) target = $region21
  $region20: #{res_block_forward.11} parent=0 // pred_region
    _
  $region21: #{res_block_forward.11} parent=0 // pred_fallthru
    _

// kernel: res_block_forward.13
$region0: #{res_block_forward.13}
  #allocation0 [shape = 'u32[]', space=smem, size = 0x4, offset = 0x4, fixed_abs, tag = 'smem constant byte address 0x4 - core index']
  #allocation1 [shape = 'u32[144,128]{1,0:T(1,128)}', space=vmem, size = 0x12000, scoped, tag = 'internal scratch']
  %s0 = inlined_call_operand.vmem [shape: f32[512,128], index: 0, kind: input, shape index: {}]
  %s1 = inlined_call_operand.vmem [shape: f32[1,128], index: 1, kind: input, shape index: {}]
  %s2 = inlined_call_operand.vmem [shape: f32[1,128], index: 2, kind: input, shape index: {}]
  %s3 = inlined_call_operand.vmem [shape: f32[512,128], index: 3, kind: input, shape index: {}]
  %s4 = inlined_call_operand.vmem [shape: f32[512,128], index: 4, kind: output, shape index: {}]
  %s5 = sld [smem:[#allocation0]]
  $region26: #{res_block_forward.13} parent=0
    _
  %s7 = ssub.s32 1, %s5
  %s8 = scalar_select 0, %s7, %s5
  // Predicated region
  $region2: #{res_block_forward.13} parent=0 // pred_check
    _
  $region3: #{res_block_forward.13} parent=0 // pred_check_branch
    %10 = sbr.rel (0) target = $region5
  $region4: #{res_block_forward.13} parent=0 // pred_region
    _
  $region5: #{res_block_forward.13} parent=0 // pred_fallthru
    _
  // Predicated region
  $region6: #{res_block_forward.13} parent=0 // pred_check
    _
  $region7: #{res_block_forward.13} parent=0 // pred_check_branch
    %12 = sbr.rel (0) target = $region9
  $region8: #{res_block_forward.13} parent=0 // pred_region
    _
  $region9: #{res_block_forward.13} parent=0 // pred_fallthru
    _
  // Predicated region
  $region10: #{res_block_forward.13} parent=0 // pred_check
    _
  $region11: #{res_block_forward.13} parent=0 // pred_check_branch
    %14 = sbr.rel (0) target = $region13
  $region12: #{res_block_forward.13} parent=0 // pred_region
    _
  $region13: #{res_block_forward.13} parent=0 // pred_fallthru
    _
  // Predicated region
  $region14: #{res_block_forward.13} parent=0 // pred_check
    _
  $region15: #{res_block_forward.13} parent=0 // pred_check_branch
    %16 = sbr.rel (0) target = $region17
  $region16: #{res_block_forward.13} parent=0 // pred_region
    _
  $region17: #{res_block_forward.13} parent=0 // pred_fallthru
    _
  %v17 = vld [vmem:[%s0] sm:$0xff]
  %v18 = vld [vmem:[%s0 + $0x8] sm:$0xff]
  %v19 = vld [vmem:[%s0 + $0x10] sm:$0xff]
  %v20 = vld [vmem:[%s0 + $0x18] sm:$0xff]
  %v21 = vld [vmem:[%s0 + $0x20] sm:$0xff]
  %v22 = vld [vmem:[%s0 + $0x28] sm:$0xff]
  %v23 = vld [vmem:[%s0 + $0x30] sm:$0xff]
  %v24 = vld [vmem:[%s0 + $0x38] sm:$0xff]
  %v25 = vld [vmem:[%s0 + $0x40] sm:$0xff]
  %v26 = vld [vmem:[%s0 + $0x48] sm:$0xff]
  %v27 = vld [vmem:[%s0 + $0x50] sm:$0xff]
  %v28 = vld [vmem:[%s0 + $0x58] sm:$0xff]
  %v29 = vld [vmem:[%s0 + $0x60] sm:$0xff]
  %v30 = vld [vmem:[%s0 + $0x68] sm:$0xff]
  %v31 = vld [vmem:[%s0 + $0x70] sm:$0xff]
  %v32 = vld [vmem:[%s0 + $0x78] sm:$0xff]
  %v33 = vld [vmem:[%s0 + $0x80] sm:$0xff]
  %v34 = vld [vmem:[%s0 + $0x88] sm:$0xff]
  %v35 = vld [vmem:[%s0 + $0x90] sm:$0xff]
  %v36 = vld [vmem:[%s0 + $0x98] sm:$0xff]
  %v37 = vld [vmem:[%s0 + $0xa0] sm:$0xff]
  %v38 = vld [vmem:[%s0 + $0xa8] sm:$0xff]
  %v39 = vld [vmem:[%s0 + $0xb0] sm:$0xff]
  %v40 = vld [vmem:[%s0 + $0xb8] sm:$0xff]
  %v41 = vld [vmem:[%s0 + $0xc0] sm:$0xff]
  %v42 = vld [vmem:[%s0 + $0xc8] sm:$0xff]
  %v43 = vld [vmem:[%s0 + $0xd0] sm:$0xff]
  %v44 = vld [vmem:[%s0 + $0xd8] sm:$0xff]
  %v45 = vld [vmem:[%s0 + $0xe0] sm:$0xff]
  %v46 = vld [vmem:[%s0 + $0xe8] sm:$0xff]
  %v47 = vld [vmem:[%s0 + $0xf0] sm:$0xff]
  %v48 = vld [vmem:[%s0 + $0xf8] sm:$0xff]
  %v49 = vld [vmem:[%s0 + $0x100] sm:$0xff]
  %v50 = vld [vmem:[%s0 + $0x108] sm:$0xff]
  %v51 = vld [vmem:[%s0 + $0x110] sm:$0xff]
  %v52 = vld [vmem:[%s0 + $0x118] sm:$0xff]
  %v53 = vld [vmem:[%s0 + $0x120] sm:$0xff]
  %v54 = vld [vmem:[%s0 + $0x128] sm:$0xff]
  %v55 = vld [vmem:[%s0 + $0x130] sm:$0xff]
  %v56 = vld [vmem:[%s0 + $0x138] sm:$0xff]
  %v57 = vld [vmem:[%s0 + $0x140] sm:$0xff]
  %v58 = vld [vmem:[%s0 + $0x148] sm:$0xff]
  %v59 = vld [vmem:[%s0 + $0x150] sm:$0xff]
  %v60 = vld [vmem:[%s0 + $0x158] sm:$0xff]
  %v61 = vld [vmem:[%s0 + $0x160] sm:$0xff]
  %v62 = vld [vmem:[%s0 + $0x168] sm:$0xff]
  %v63 = vld [vmem:[%s0 + $0x170] sm:$0xff]
  %v64 = vld [vmem:[%s0 + $0x178] sm:$0xff]
  %v65 = vld [vmem:[%s0 + $0x180] sm:$0xff]
  %v66 = vld [vmem:[%s0 + $0x188] sm:$0xff]
  %v67 = vld [vmem:[%s0 + $0x190] sm:$0xff]
  %v68 = vld [vmem:[%s0 + $0x198] sm:$0xff]
  %v69 = vld [vmem:[%s0 + $0x1a0] sm:$0xff]
  %v70 = vld [vmem:[%s0 + $0x1a8] sm:$0xff]
  %v71 = vld [vmem:[%s0 + $0x1b0] sm:$0xff]
  %v72 = vld [vmem:[%s0 + $0x1b8] sm:$0xff]
  %v73 = vld [vmem:[%s0 + $0x1c0] sm:$0xff]
  %v74 = vld [vmem:[%s0 + $0x1c8] sm:$0xff]
  %v75 = vld [vmem:[%s0 + $0x1d0] sm:$0xff]
  %v76 = vld [vmem:[%s0 + $0x1d8] sm:$0xff]
  %v77 = vld [vmem:[%s0 + $0x1e0] sm:$0xff]
  %v78 = vld [vmem:[%s0 + $0x1e8] sm:$0xff]
  %v79 = vld [vmem:[%s0 + $0x1f0] sm:$0xff]
  %v80 = vld [vmem:[%s0 + $0x1f8] sm:$0xff]
  %v81 = vld [vmem:[%s1] sm:$0x1]
  %v83 = vlaneseq
  %v84 = vshrl.u32 %v83, 7
  %v85 = vsub.s32 0, %v84
  %v86 = vrot.slane %v81, %v85
  %v88 = vmul.f32 %v17, %v86
  %v89 = vmul.f32 %v18, %v86
  %v90 = vmul.f32 %v19, %v86
  %v91 = vmul.f32 %v20, %v86
  %v92 = vmul.f32 %v21, %v86
  %v93 = vmul.f32 %v22, %v86
  %v94 = vmul.f32 %v23, %v86
  %v95 = vmul.f32 %v24, %v86
  %v96 = vmul.f32 %v25, %v86
  %v97 = vmul.f32 %v26, %v86
  %v98 = vmul.f32 %v27, %v86
  %v99 = vmul.f32 %v28, %v86
  %v100 = vmul.f32 %v29, %v86
  %v101 = vmul.f32 %v30, %v86
  %v102 = vmul.f32 %v31, %v86
  %v103 = vmul.f32 %v32, %v86
  %v104 = vmul.f32 %v33, %v86
  %v105 = vmul.f32 %v34, %v86
  %v106 = vmul.f32 %v35, %v86
  %v107 = vmul.f32 %v36, %v86
  %v108 = vmul.f32 %v37, %v86
  %v109 = vmul.f32 %v38, %v86
  %v110 = vmul.f32 %v39, %v86
  %v111 = vmul.f32 %v40, %v86
  %v112 = vmul.f32 %v41, %v86
  %v113 = vmul.f32 %v42, %v86
  %v114 = vmul.f32 %v43, %v86
  %v115 = vmul.f32 %v44, %v86
  %v116 = vmul.f32 %v45, %v86
  %v117 = vmul.f32 %v46, %v86
  %v118 = vmul.f32 %v47, %v86
  %v119 = vmul.f32 %v48, %v86
  %v120 = vmul.f32 %v49, %v86
  %v121 = vmul.f32 %v50, %v86
  %v122 = vmul.f32 %v51, %v86
  %v123 = vmul.f32 %v52, %v86
  %v124 = vmul.f32 %v53, %v86
  %v125 = vmul.f32 %v54, %v86
  %v126 = vmul.f32 %v55, %v86
  %v127 = vmul.f32 %v56, %v86
  %v128 = vmul.f32 %v57, %v86
  %v129 = vmul.f32 %v58, %v86
  %v130 = vmul.f32 %v59, %v86
  %v131 = vmul.f32 %v60, %v86
  %v132 = vmul.f32 %v61, %v86
  %v133 = vmul.f32 %v62, %v86
  %v134 = vmul.f32 %v63, %v86
  %v135 = vmul.f32 %v64, %v86
  %v136 = vmul.f32 %v65, %v86
  %v137 = vmul.f32 %v66, %v86
  %v138 = vmul.f32 %v67, %v86
  %v139 = vmul.f32 %v68, %v86
  %v140 = vmul.f32 %v69, %v86
  %v141 = vmul.f32 %v70, %v86
  %v142 = vmul.f32 %v71, %v86
  %v143 = vmul.f32 %v72, %v86
  %v144 = vmul.f32 %v73, %v86
  %v145 = vmul.f32 %v74, %v86
  %v146 = vmul.f32 %v75, %v86
  %v147 = vmul.f32 %v76, %v86
  %v148 = vmul.f32 %v77, %v86
  %v149 = vmul.f32 %v78, %v86
  %v150 = vmul.f32 %v79, %v86
  %v151 = vmul.f32 %v80, %v86
  %v152 = vld [vmem:[%s2] sm:$0x1]
  %v154 = vlaneseq
  %v155 = vshrl.u32 %v154, 7
  %v156 = vsub.s32 0, %v155
  %v157 = vrot.slane %v152, %v156
  %v159 = vadd.f32 %v88, %v157
  %v160 = vadd.f32 %v89, %v157
  %v161 = vadd.f32 %v90, %v157
  %v162 = vadd.f32 %v91, %v157
  %v163 = vadd.f32 %v92, %v157
  %v164 = vadd.f32 %v93, %v157
  %v165 = vadd.f32 %v94, %v157
  %v166 = vadd.f32 %v95, %v157
  %v167 = vadd.f32 %v96, %v157
  %v168 = vadd.f32 %v97, %v157
  %v169 = vadd.f32 %v98, %v157
  %v170 = vadd.f32 %v99, %v157
  %v171 = vadd.f32 %v100, %v157
  %v172 = vadd.f32 %v101, %v157
  %v173 = vadd.f32 %v102, %v157
  %v174 = vadd.f32 %v103, %v157
  %v175 = vadd.f32 %v104, %v157
  %v176 = vadd.f32 %v105, %v157
  %v177 = vadd.f32 %v106, %v157
  %v178 = vadd.f32 %v107, %v157
  %v179 = vadd.f32 %v108, %v157
  %v180 = vadd.f32 %v109, %v157
  %v181 = vadd.f32 %v110, %v157
  %v182 = vadd.f32 %v111, %v157
  %v183 = vadd.f32 %v112, %v157
  %v184 = vadd.f32 %v113, %v157
  %v185 = vadd.f32 %v114, %v157
  %v186 = vadd.f32 %v115, %v157
  %v187 = vadd.f32 %v116, %v157
  %v188 = vadd.f32 %v117, %v157
  %v189 = vadd.f32 %v118, %v157
  %v190 = vadd.f32 %v119, %v157
  %v191 = vadd.f32 %v120, %v157
  %v192 = vadd.f32 %v121, %v157
  %v193 = vadd.f32 %v122, %v157
  %v194 = vadd.f32 %v123, %v157
  %v195 = vadd.f32 %v124, %v157
  %v196 = vadd.f32 %v125, %v157
  %v197 = vadd.f32 %v126, %v157
  %v198 = vadd.f32 %v127, %v157
  %v199 = vadd.f32 %v128, %v157
  %v200 = vadd.f32 %v129, %v157
  %v201 = vadd.f32 %v130, %v157
  %v202 = vadd.f32 %v131, %v157
  %v203 = vadd.f32 %v132, %v157
  %v204 = vadd.f32 %v133, %v157
  %v205 = vadd.f32 %v134, %v157
  %v206 = vadd.f32 %v135, %v157
  %v207 = vadd.f32 %v136, %v157
  %v208 = vadd.f32 %v137, %v157
  %v209 = vadd.f32 %v138, %v157
  %v210 = vadd.f32 %v139, %v157
  %v211 = vadd.f32 %v140, %v157
  %v212 = vadd.f32 %v141, %v157
  %v213 = vadd.f32 %v142, %v157
  %v214 = vadd.f32 %v143, %v157
  %v215 = vadd.f32 %v144, %v157
  %v216 = vadd.f32 %v145, %v157
  %v217 = vadd.f32 %v146, %v157
  %v218 = vadd.f32 %v147, %v157
  %v219 = vadd.f32 %v148, %v157
  %v220 = vadd.f32 %v149, %v157
  %v221 = vadd.f32 %v150, %v157
  %v222 = vadd.f32 %v151, %v157
  %v223 = vld [vmem:[%s3] sm:$0xff]
  %v224 = vld [vmem:[%s3 + $0x8] sm:$0xff]
  %v225 = vld [vmem:[%s3 + $0x10] sm:$0xff]
  %v226 = vld [vmem:[%s3 + $0x18] sm:$0xff]
  %v227 = vld [vmem:[%s3 + $0x20] sm:$0xff]
  %v228 = vld [vmem:[%s3 + $0x28] sm:$0xff]
  %v229 = vld [vmem:[%s3 + $0x30] sm:$0xff]
  %v230 = vld [vmem:[%s3 + $0x38] sm:$0xff]
  %v231 = vld [vmem:[%s3 + $0x40] sm:$0xff]
  %v232 = vld [vmem:[%s3 + $0x48] sm:$0xff]
  %v233 = vld [vmem:[%s3 + $0x50] sm:$0xff]
  %v234 = vld [vmem:[%s3 + $0x58] sm:$0xff]
  %v235 = vld [vmem:[%s3 + $0x60] sm:$0xff]
  %v236 = vld [vmem:[%s3 + $0x68] sm:$0xff]
  %v237 = vld [vmem:[%s3 + $0x70] sm:$0xff]
  %v238 = vld [vmem:[%s3 + $0x78] sm:$0xff]
  %v239 = vld [vmem:[%s3 + $0x80] sm:$0xff]
  %v240 = vld [vmem:[%s3 + $0x88] sm:$0xff]
  %v241 = vld [vmem:[%s3 + $0x90] sm:$0xff]
  %v242 = vld [vmem:[%s3 + $0x98] sm:$0xff]
  %v243 = vld [vmem:[%s3 + $0xa0] sm:$0xff]
  %v244 = vld [vmem:[%s3 + $0xa8] sm:$0xff]
  %v245 = vld [vmem:[%s3 + $0xb0] sm:$0xff]
  %v246 = vld [vmem:[%s3 + $0xb8] sm:$0xff]
  %v247 = vld [vmem:[%s3 + $0xc0] sm:$0xff]
  %v248 = vld [vmem:[%s3 + $0xc8] sm:$0xff]
  %v249 = vld [vmem:[%s3 + $0xd0] sm:$0xff]
  %v250 = vld [vmem:[%s3 + $0xd8] sm:$0xff]
  %v251 = vld [vmem:[%s3 + $0xe0] sm:$0xff]
  %v252 = vld [vmem:[%s3 + $0xe8] sm:$0xff]
  %v253 = vld [vmem:[%s3 + $0xf0] sm:$0xff]
  %v254 = vld [vmem:[%s3 + $0xf8] sm:$0xff]
  %v255 = vld [vmem:[%s3 + $0x100] sm:$0xff]
  %v256 = vld [vmem:[%s3 + $0x108] sm:$0xff]
  %v257 = vld [vmem:[%s3 + $0x110] sm:$0xff]
  %v258 = vld [vmem:[%s3 + $0x118] sm:$0xff]
  %v259 = vld [vmem:[%s3 + $0x120] sm:$0xff]
  %v260 = vld [vmem:[%s3 + $0x128] sm:$0xff]
  %v261 = vld [vmem:[%s3 + $0x130] sm:$0xff]
  %v262 = vld [vmem:[%s3 + $0x138] sm:$0xff]
  %v263 = vld [vmem:[%s3 + $0x140] sm:$0xff]
  %v264 = vld [vmem:[%s3 + $0x148] sm:$0xff]
  %v265 = vld [vmem:[%s3 + $0x150] sm:$0xff]
  %v266 = vld [vmem:[%s3 + $0x158] sm:$0xff]
  %v267 = vld [vmem:[%s3 + $0x160] sm:$0xff]
  %v268 = vld [vmem:[%s3 + $0x168] sm:$0xff]
  %v269 = vld [vmem:[%s3 + $0x170] sm:$0xff]
  %v270 = vld [vmem:[%s3 + $0x178] sm:$0xff]
  %v271 = vld [vmem:[%s3 + $0x180] sm:$0xff]
  %v272 = vld [vmem:[%s3 + $0x188] sm:$0xff]
  %v273 = vld [vmem:[%s3 + $0x190] sm:$0xff]
  %v274 = vld [vmem:[%s3 + $0x198] sm:$0xff]
  %v275 = vld [vmem:[%s3 + $0x1a0] sm:$0xff]
  %v276 = vld [vmem:[%s3 + $0x1a8] sm:$0xff]
  %v277 = vld [vmem:[%s3 + $0x1b0] sm:$0xff]
  %v278 = vld [vmem:[%s3 + $0x1b8] sm:$0xff]
  %v279 = vld [vmem:[%s3 + $0x1c0] sm:$0xff]
  %v280 = vld [vmem:[%s3 + $0x1c8] sm:$0xff]
  %v281 = vld [vmem:[%s3 + $0x1d0] sm:$0xff]
  %v282 = vld [vmem:[%s3 + $0x1d8] sm:$0xff]
  %v283 = vld [vmem:[%s3 + $0x1e0] sm:$0xff]
  %v284 = vld [vmem:[%s3 + $0x1e8] sm:$0xff]
  %v285 = vld [vmem:[%s3 + $0x1f0] sm:$0xff]
  %v286 = vld [vmem:[%s3 + $0x1f8] sm:$0xff]
  %vm287 = vcmp.ge.f32.partialorder %v159, 0.0
  %vm288 = vcmp.ge.f32.partialorder %v160, 0.0
  %vm289 = vcmp.ge.f32.partialorder %v161, 0.0
  %vm290 = vcmp.ge.f32.partialorder %v162, 0.0
  %vm291 = vcmp.ge.f32.partialorder %v163, 0.0
  %vm292 = vcmp.ge.f32.partialorder %v164, 0.0
  %vm293 = vcmp.ge.f32.partialorder %v165, 0.0
  %vm294 = vcmp.ge.f32.partialorder %v166, 0.0
  %vm295 = vcmp.ge.f32.partialorder %v167, 0.0
  %vm296 = vcmp.ge.f32.partialorder %v168, 0.0
  %vm297 = vcmp.ge.f32.partialorder %v169, 0.0
  %vm298 = vcmp.ge.f32.partialorder %v170, 0.0
  %vm299 = vcmp.ge.f32.partialorder %v171, 0.0
  %vm300 = vcmp.ge.f32.partialorder %v172, 0.0
  %vm301 = vcmp.ge.f32.partialorder %v173, 0.0
  %vm302 = vcmp.ge.f32.partialorder %v174, 0.0
  %vm303 = vcmp.ge.f32.partialorder %v175, 0.0
  %vm304 = vcmp.ge.f32.partialorder %v176, 0.0
  %vm305 = vcmp.ge.f32.partialorder %v177, 0.0
  %vm306 = vcmp.ge.f32.partialorder %v178, 0.0
  %vm307 = vcmp.ge.f32.partialorder %v179, 0.0
  %vm308 = vcmp.ge.f32.partialorder %v180, 0.0
  %vm309 = vcmp.ge.f32.partialorder %v181, 0.0
  %vm310 = vcmp.ge.f32.partialorder %v182, 0.0
  %vm311 = vcmp.ge.f32.partialorder %v183, 0.0
  %vm312 = vcmp.ge.f32.partialorder %v184, 0.0
  %vm313 = vcmp.ge.f32.partialorder %v185, 0.0
  %vm314 = vcmp.ge.f32.partialorder %v186, 0.0
  %vm315 = vcmp.ge.f32.partialorder %v187, 0.0
  %vm316 = vcmp.ge.f32.partialorder %v188, 0.0
  %vm317 = vcmp.ge.f32.partialorder %v189, 0.0
  %vm318 = vcmp.ge.f32.partialorder %v190, 0.0
  %vm319 = vcmp.ge.f32.partialorder %v191, 0.0
  %vm320 = vcmp.ge.f32.partialorder %v192, 0.0
  %vm321 = vcmp.ge.f32.partialorder %v193, 0.0
  %vm322 = vcmp.ge.f32.partialorder %v194, 0.0
  %vm323 = vcmp.ge.f32.partialorder %v195, 0.0
  %vm324 = vcmp.ge.f32.partialorder %v196, 0.0
  %vm325 = vcmp.ge.f32.partialorder %v197, 0.0
  %vm326 = vcmp.ge.f32.partialorder %v198, 0.0
  %vm327 = vcmp.ge.f32.partialorder %v199, 0.0
  %vm328 = vcmp.ge.f32.partialorder %v200, 0.0
  %vm329 = vcmp.ge.f32.partialorder %v201, 0.0
  %vm330 = vcmp.ge.f32.partialorder %v202, 0.0
  %vm331 = vcmp.ge.f32.partialorder %v203, 0.0
  %vm332 = vcmp.ge.f32.partialorder %v204, 0.0
  %vm333 = vcmp.ge.f32.partialorder %v205, 0.0
  %vm334 = vcmp.ge.f32.partialorder %v206, 0.0
  %vm335 = vcmp.ge.f32.partialorder %v207, 0.0
  %vm336 = vcmp.ge.f32.partialorder %v208, 0.0
  %vm337 = vcmp.ge.f32.partialorder %v209, 0.0
  %vm338 = vcmp.ge.f32.partialorder %v210, 0.0
  %vm339 = vcmp.ge.f32.partialorder %v211, 0.0
  %vm340 = vcmp.ge.f32.partialorder %v212, 0.0
  %vm341 = vcmp.ge.f32.partialorder %v213, 0.0
  %vm342 = vcmp.ge.f32.partialorder %v214, 0.0
  %vm343 = vcmp.ge.f32.partialorder %v215, 0.0
  %vm344 = vcmp.ge.f32.partialorder %v216, 0.0
  %vm345 = vcmp.ge.f32.partialorder %v217, 0.0
  %vm346 = vcmp.ge.f32.partialorder %v218, 0.0
  %vm347 = vcmp.ge.f32.partialorder %v219, 0.0
  %vm348 = vcmp.ge.f32.partialorder %v220, 0.0
  %vm349 = vcmp.ge.f32.partialorder %v221, 0.0
  %vm350 = vcmp.ge.f32.partialorder %v222, 0.0
  %v351 = vmul.f32 %v159, 0.01
  %v352 = vmul.f32 %v160, 0.01
  %v353 = vmul.f32 %v161, 0.01
  %v354 = vmul.f32 %v162, 0.01
  %v355 = vmul.f32 %v163, 0.01
  %v356 = vmul.f32 %v164, 0.01
  %v357 = vmul.f32 %v165, 0.01
  %v358 = vmul.f32 %v166, 0.01
  %v359 = vmul.f32 %v167, 0.01
  %v360 = vmul.f32 %v168, 0.01
  %v361 = vmul.f32 %v169, 0.01
  %v362 = vmul.f32 %v170, 0.01
  %v363 = vmul.f32 %v171, 0.01
  %v364 = vmul.f32 %v172, 0.01
  %v365 = vmul.f32 %v173, 0.01
  %v366 = vmul.f32 %v174, 0.01
  %v367 = vmul.f32 %v175, 0.01
  %v368 = vmul.f32 %v176, 0.01
  %v369 = vmul.f32 %v177, 0.01
  %v370 = vmul.f32 %v178, 0.01
  %v371 = vmul.f32 %v179, 0.01
  %v372 = vmul.f32 %v180, 0.01
  %v373 = vmul.f32 %v181, 0.01
  %v374 = vmul.f32 %v182, 0.01
  %v375 = vmul.f32 %v183, 0.01
  %v376 = vmul.f32 %v184, 0.01
  %v377 = vmul.f32 %v185, 0.01
  %v378 = vmul.f32 %v186, 0.01
  %v379 = vmul.f32 %v187, 0.01
  %v380 = vmul.f32 %v188, 0.01
  %v381 = vmul.f32 %v189, 0.01
  %v382 = vmul.f32 %v190, 0.01
  %v383 = vmul.f32 %v191, 0.01
  %v384 = vmul.f32 %v192, 0.01
  %v385 = vmul.f32 %v193, 0.01
  %v386 = vmul.f32 %v194, 0.01
  %v387 = vmul.f32 %v195, 0.01
  %v388 = vmul.f32 %v196, 0.01
  %v389 = vmul.f32 %v197, 0.01
  %v390 = vmul.f32 %v198, 0.01
  %v391 = vmul.f32 %v199, 0.01
  %v392 = vmul.f32 %v200, 0.01
  %v393 = vmul.f32 %v201, 0.01
  %v394 = vmul.f32 %v202, 0.01
  %v395 = vmul.f32 %v203, 0.01
  %v396 = vmul.f32 %v204, 0.01
  %v397 = vmul.f32 %v205, 0.01
  %v398 = vmul.f32 %v206, 0.01
  %v399 = vmul.f32 %v207, 0.01
  %v400 = vmul.f32 %v208, 0.01
  %v401 = vmul.f32 %v209, 0.01
  %v402 = vmul.f32 %v210, 0.01
  %v403 = vmul.f32 %v211, 0.01
  %v404 = vmul.f32 %v212, 0.01
  %v405 = vmul.f32 %v213, 0.01
  %v406 = vmul.f32 %v214, 0.01
  %v407 = vmul.f32 %v215, 0.01
  %v408 = vmul.f32 %v216, 0.01
  %v409 = vmul.f32 %v217, 0.01
  %v410 = vmul.f32 %v218, 0.01
  %v411 = vmul.f32 %v219, 0.01
  %v412 = vmul.f32 %v220, 0.01
  %v413 = vmul.f32 %v221, 0.01
  %v414 = vmul.f32 %v222, 0.01
  %v415 = vsel %vm287, %v159, %v351
  %v416 = vsel %vm288, %v160, %v352
  %v417 = vsel %vm289, %v161, %v353
  %v418 = vsel %vm290, %v162, %v354
  %v419 = vsel %vm291, %v163, %v355
  %v420 = vsel %vm292, %v164, %v356
  %v421 = vsel %vm293, %v165, %v357
  %v422 = vsel %vm294, %v166, %v358
  %v423 = vsel %vm295, %v167, %v359
  %v424 = vsel %vm296, %v168, %v360
  %v425 = vsel %vm297, %v169, %v361
  %v426 = vsel %vm298, %v170, %v362
  %v427 = vsel %vm299, %v171, %v363
  %v428 = vsel %vm300, %v172, %v364
  %v429 = vsel %vm301, %v173, %v365
  %v430 = vsel %vm302, %v174, %v366
  %v431 = vsel %vm303, %v175, %v367
  %v432 = vsel %vm304, %v176, %v368
  %v433 = vsel %vm305, %v177, %v369
  %v434 = vsel %vm306, %v178, %v370
  %v435 = vsel %vm307, %v179, %v371
  %v436 = vsel %vm308, %v180, %v372
  %v437 = vsel %vm309, %v181, %v373
  %v438 = vsel %vm310, %v182, %v374
  %v439 = vsel %vm311, %v183, %v375
  %v440 = vsel %vm312, %v184, %v376
  %v441 = vsel %vm313, %v185, %v377
  %v442 = vsel %vm314, %v186, %v378
  %v443 = vsel %vm315, %v187, %v379
  %v444 = vsel %vm316, %v188, %v380
  %v445 = vsel %vm317, %v189, %v381
  %v446 = vsel %vm318, %v190, %v382
  %v447 = vsel %vm319, %v191, %v383
  %v448 = vsel %vm320, %v192, %v384
  %v449 = vsel %vm321, %v193, %v385
  %v450 = vsel %vm322, %v194, %v386
  %v451 = vsel %vm323, %v195, %v387
  %v452 = vsel %vm324, %v196, %v388
  %v453 = vsel %vm325, %v197, %v389
  %v454 = vsel %vm326, %v198, %v390
  %v455 = vsel %vm327, %v199, %v391
  %v456 = vsel %vm328, %v200, %v392
  %v457 = vsel %vm329, %v201, %v393
  %v458 = vsel %vm330, %v202, %v394
  %v459 = vsel %vm331, %v203, %v395
  %v460 = vsel %vm332, %v204, %v396
  %v461 = vsel %vm333, %v205, %v397
  %v462 = vsel %vm334, %v206, %v398
  %v463 = vsel %vm335, %v207, %v399
  %v464 = vsel %vm336, %v208, %v400
  %v465 = vsel %vm337, %v209, %v401
  %v466 = vsel %vm338, %v210, %v402
  %v467 = vsel %vm339, %v211, %v403
  %v468 = vsel %vm340, %v212, %v404
  %v469 = vsel %vm341, %v213, %v405
  %v470 = vsel %vm342, %v214, %v406
  %v471 = vsel %vm343, %v215, %v407
  %v472 = vsel %vm344, %v216, %v408
  %v473 = vsel %vm345, %v217, %v409
  %v474 = vsel %vm346, %v218, %v410
  %v475 = vsel %vm347, %v219, %v411
  %v476 = vsel %vm348, %v220, %v412
  %v477 = vsel %vm349, %v221, %v413
  %v478 = vsel %vm350, %v222, %v414
  %v479 = vadd.f32 %v223, %v415
  %v480 = vadd.f32 %v224, %v416
  %v481 = vadd.f32 %v225, %v417
  %v482 = vadd.f32 %v226, %v418
  %v483 = vadd.f32 %v227, %v419
  %v484 = vadd.f32 %v228, %v420
  %v485 = vadd.f32 %v229, %v421
  %v486 = vadd.f32 %v230, %v422
  %v487 = vadd.f32 %v231, %v423
  %v488 = vadd.f32 %v232, %v424
  %v489 = vadd.f32 %v233, %v425
  %v490 = vadd.f32 %v234, %v426
  %v491 = vadd.f32 %v235, %v427
  %v492 = vadd.f32 %v236, %v428
  %v493 = vadd.f32 %v237, %v429
  %v494 = vadd.f32 %v238, %v430
  %v495 = vadd.f32 %v239, %v431
  %v496 = vadd.f32 %v240, %v432
  %v497 = vadd.f32 %v241, %v433
  %v498 = vadd.f32 %v242, %v434
  %v499 = vadd.f32 %v243, %v435
  %v500 = vadd.f32 %v244, %v436
  %v501 = vadd.f32 %v245, %v437
  %v502 = vadd.f32 %v246, %v438
  %v503 = vadd.f32 %v247, %v439
  %v504 = vadd.f32 %v248, %v440
  %v505 = vadd.f32 %v249, %v441
  %v506 = vadd.f32 %v250, %v442
  %v507 = vadd.f32 %v251, %v443
  %v508 = vadd.f32 %v252, %v444
  %v509 = vadd.f32 %v253, %v445
  %v510 = vadd.f32 %v254, %v446
  %v511 = vadd.f32 %v255, %v447
  %v512 = vadd.f32 %v256, %v448
  %v513 = vadd.f32 %v257, %v449
  %v514 = vadd.f32 %v258, %v450
  %v515 = vadd.f32 %v259, %v451
  %v516 = vadd.f32 %v260, %v452
  %v517 = vadd.f32 %v261, %v453
  %v518 = vadd.f32 %v262, %v454
  %v519 = vadd.f32 %v263, %v455
  %v520 = vadd.f32 %v264, %v456
  %v521 = vadd.f32 %v265, %v457
  %v522 = vadd.f32 %v266, %v458
  %v523 = vadd.f32 %v267, %v459
  %v524 = vadd.f32 %v268, %v460
  %v525 = vadd.f32 %v269, %v461
  %v526 = vadd.f32 %v270, %v462
  %v527 = vadd.f32 %v271, %v463
  %v528 = vadd.f32 %v272, %v464
  %v529 = vadd.f32 %v273, %v465
  %v530 = vadd.f32 %v274, %v466
  %v531 = vadd.f32 %v275, %v467
  %v532 = vadd.f32 %v276, %v468
  %v533 = vadd.f32 %v277, %v469
  %v534 = vadd.f32 %v278, %v470
  %v535 = vadd.f32 %v279, %v471
  %v536 = vadd.f32 %v280, %v472
  %v537 = vadd.f32 %v281, %v473
  %v538 = vadd.f32 %v282, %v474
  %v539 = vadd.f32 %v283, %v475
  %v540 = vadd.f32 %v284, %v476
  %v541 = vadd.f32 %v285, %v477
  %v542 = vadd.f32 %v286, %v478
  %543 = vst [vmem:[%s4] sm:$0xff] %v479
  %544 = vst [vmem:[%s4 + $0x8] sm:$0xff] %v480
  %545 = vst [vmem:[%s4 + $0x10] sm:$0xff] %v481
  %546 = vst [vmem:[%s4 + $0x18] sm:$0xff] %v482
  %547 = vst [vmem:[%s4 + $0x20] sm:$0xff] %v483
  %548 = vst [vmem:[%s4 + $0x28] sm:$0xff] %v484
  %549 = vst [vmem:[%s4 + $0x30] sm:$0xff] %v485
  %550 = vst [vmem:[%s4 + $0x38] sm:$0xff] %v486
  %551 = vst [vmem:[%s4 + $0x40] sm:$0xff] %v487
  %552 = vst [vmem:[%s4 + $0x48] sm:$0xff] %v488
  %553 = vst [vmem:[%s4 + $0x50] sm:$0xff] %v489
  %554 = vst [vmem:[%s4 + $0x58] sm:$0xff] %v490
  %555 = vst [vmem:[%s4 + $0x60] sm:$0xff] %v491
  %556 = vst [vmem:[%s4 + $0x68] sm:$0xff] %v492
  %557 = vst [vmem:[%s4 + $0x70] sm:$0xff] %v493
  %558 = vst [vmem:[%s4 + $0x78] sm:$0xff] %v494
  %559 = vst [vmem:[%s4 + $0x80] sm:$0xff] %v495
  %560 = vst [vmem:[%s4 + $0x88] sm:$0xff] %v496
  %561 = vst [vmem:[%s4 + $0x90] sm:$0xff] %v497
  %562 = vst [vmem:[%s4 + $0x98] sm:$0xff] %v498
  %563 = vst [vmem:[%s4 + $0xa0] sm:$0xff] %v499
  %564 = vst [vmem:[%s4 + $0xa8] sm:$0xff] %v500
  %565 = vst [vmem:[%s4 + $0xb0] sm:$0xff] %v501
  %566 = vst [vmem:[%s4 + $0xb8] sm:$0xff] %v502
  %567 = vst [vmem:[%s4 + $0xc0] sm:$0xff] %v503
  %568 = vst [vmem:[%s4 + $0xc8] sm:$0xff] %v504
  %569 = vst [vmem:[%s4 + $0xd0] sm:$0xff] %v505
  %570 = vst [vmem:[%s4 + $0xd8] sm:$0xff] %v506
  %571 = vst [vmem:[%s4 + $0xe0] sm:$0xff] %v507
  %572 = vst [vmem:[%s4 + $0xe8] sm:$0xff] %v508
  %573 = vst [vmem:[%s4 + $0xf0] sm:$0xff] %v509
  %574 = vst [vmem:[%s4 + $0xf8] sm:$0xff] %v510
  %575 = vst [vmem:[%s4 + $0x100] sm:$0xff] %v511
  %576 = vst [vmem:[%s4 + $0x108] sm:$0xff] %v512
  %577 = vst [vmem:[%s4 + $0x110] sm:$0xff] %v513
  %578 = vst [vmem:[%s4 + $0x118] sm:$0xff] %v514
  %579 = vst [vmem:[%s4 + $0x120] sm:$0xff] %v515
  %580 = vst [vmem:[%s4 + $0x128] sm:$0xff] %v516
  %581 = vst [vmem:[%s4 + $0x130] sm:$0xff] %v517
  %582 = vst [vmem:[%s4 + $0x138] sm:$0xff] %v518
  %583 = vst [vmem:[%s4 + $0x140] sm:$0xff] %v519
  %584 = vst [vmem:[%s4 + $0x148] sm:$0xff] %v520
  %585 = vst [vmem:[%s4 + $0x150] sm:$0xff] %v521
  %586 = vst [vmem:[%s4 + $0x158] sm:$0xff] %v522
  %587 = vst [vmem:[%s4 + $0x160] sm:$0xff] %v523
  %588 = vst [vmem:[%s4 + $0x168] sm:$0xff] %v524
  %589 = vst [vmem:[%s4 + $0x170] sm:$0xff] %v525
  %590 = vst [vmem:[%s4 + $0x178] sm:$0xff] %v526
  %591 = vst [vmem:[%s4 + $0x180] sm:$0xff] %v527
  %592 = vst [vmem:[%s4 + $0x188] sm:$0xff] %v528
  %593 = vst [vmem:[%s4 + $0x190] sm:$0xff] %v529
  %594 = vst [vmem:[%s4 + $0x198] sm:$0xff] %v530
  %595 = vst [vmem:[%s4 + $0x1a0] sm:$0xff] %v531
  %596 = vst [vmem:[%s4 + $0x1a8] sm:$0xff] %v532
  %597 = vst [vmem:[%s4 + $0x1b0] sm:$0xff] %v533
  %598 = vst [vmem:[%s4 + $0x1b8] sm:$0xff] %v534
  %599 = vst [vmem:[%s4 + $0x1c0] sm:$0xff] %v535
  %600 = vst [vmem:[%s4 + $0x1c8] sm:$0xff] %v536
  %601 = vst [vmem:[%s4 + $0x1d0] sm:$0xff] %v537
  %602 = vst [vmem:[%s4 + $0x1d8] sm:$0xff] %v538
  %603 = vst [vmem:[%s4 + $0x1e0] sm:$0xff] %v539
  %604 = vst [vmem:[%s4 + $0x1e8] sm:$0xff] %v540
  %605 = vst [vmem:[%s4 + $0x1f0] sm:$0xff] %v541
  %606 = vst [vmem:[%s4 + $0x1f8] sm:$0xff] %v542
  // Predicated region
  $region18: #{res_block_forward.13} parent=0 // pred_check
    _
  $region19: #{res_block_forward.13} parent=0 // pred_check_branch
    %608 = sbr.rel (0) target = $region21
  $region20: #{res_block_forward.13} parent=0 // pred_region
    _
  $region21: #{res_block_forward.13} parent=0 // pred_fallthru
    _
  // Predicated region
  $region22: #{res_block_forward.13} parent=0 // pred_check
    _
  $region23: #{res_block_forward.13} parent=0 // pred_check_branch
    %610 = sbr.rel (0) target = $region25
  $region24: #{res_block_forward.13} parent=0 // pred_region
    _
  $region25: #{res_block_forward.13} parent=0 // pred_fallthru
    _

// kernel: res_block_forward.19
$region0: #{res_block_forward.19}
  #allocation0 [shape = 'u32[]', space=smem, size = 0x4, offset = 0x4, fixed_abs, tag = 'smem constant byte address 0x4 - core index']
  #allocation1 [shape = 'u32[144,128]{1,0:T(1,128)}', space=vmem, size = 0x12000, scoped, tag = 'internal scratch']
  %s0 = inlined_call_operand.vmem [shape: f32[128,128], index: 0, kind: input, shape index: {}]
  %s1 = inlined_call_operand.vmem [shape: f32[1,128], index: 1, kind: input, shape index: {}]
  %s2 = inlined_call_operand.vmem [shape: f32[1,128], index: 2, kind: input, shape index: {}]
  %s3 = inlined_call_operand.vmem [shape: f32[128,128], index: 3, kind: output, shape index: {}]
  %s4 = sld [smem:[#allocation0]]
  $region22: #{res_block_forward.19} parent=0
    _
  %s6 = ssub.s32 1, %s4
  %s7 = scalar_select 0, %s6, %s4
  // Predicated region
  $region2: #{res_block_forward.19} parent=0 // pred_check
    _
  $region3: #{res_block_forward.19} parent=0 // pred_check_branch
    %9 = sbr.rel (0) target = $region5
  $region4: #{res_block_forward.19} parent=0 // pred_region
    _
  $region5: #{res_block_forward.19} parent=0 // pred_fallthru
    _
  // Predicated region
  $region6: #{res_block_forward.19} parent=0 // pred_check
    _
  $region7: #{res_block_forward.19} parent=0 // pred_check_branch
    %11 = sbr.rel (0) target = $region9
  $region8: #{res_block_forward.19} parent=0 // pred_region
    _
  $region9: #{res_block_forward.19} parent=0 // pred_fallthru
    _
  // Predicated region
  $region10: #{res_block_forward.19} parent=0 // pred_check
    _
  $region11: #{res_block_forward.19} parent=0 // pred_check_branch
    %13 = sbr.rel (0) target = $region13
  $region12: #{res_block_forward.19} parent=0 // pred_region
    _
  $region13: #{res_block_forward.19} parent=0 // pred_fallthru
    _
  %v14 = vld [vmem:[%s0] sm:$0xff]
  %v15 = vld [vmem:[%s0 + $0x8] sm:$0xff]
  %v16 = vld [vmem:[%s0 + $0x10] sm:$0xff]
  %v17 = vld [vmem:[%s0 + $0x18] sm:$0xff]
  %v18 = vld [vmem:[%s0 + $0x20] sm:$0xff]
  %v19 = vld [vmem:[%s0 + $0x28] sm:$0xff]
  %v20 = vld [vmem:[%s0 + $0x30] sm:$0xff]
  %v21 = vld [vmem:[%s0 + $0x38] sm:$0xff]
  %v22 = vld [vmem:[%s0 + $0x40] sm:$0xff]
  %v23 = vld [vmem:[%s0 + $0x48] sm:$0xff]
  %v24 = vld [vmem:[%s0 + $0x50] sm:$0xff]
  %v25 = vld [vmem:[%s0 + $0x58] sm:$0xff]
  %v26 = vld [vmem:[%s0 + $0x60] sm:$0xff]
  %v27 = vld [vmem:[%s0 + $0x68] sm:$0xff]
  %v28 = vld [vmem:[%s0 + $0x70] sm:$0xff]
  %v29 = vld [vmem:[%s0 + $0x78] sm:$0xff]
  %v30 = vld [vmem:[%s1] sm:$0x1]
  %v32 = vlaneseq
  %v33 = vshrl.u32 %v32, 7
  %v34 = vsub.s32 0, %v33
  %v35 = vrot.slane %v30, %v34
  %v37 = vmul.f32 %v14, %v35
  %v38 = vmul.f32 %v15, %v35
  %v39 = vmul.f32 %v16, %v35
  %v40 = vmul.f32 %v17, %v35
  %v41 = vmul.f32 %v18, %v35
  %v42 = vmul.f32 %v19, %v35
  %v43 = vmul.f32 %v20, %v35
  %v44 = vmul.f32 %v21, %v35
  %v45 = vmul.f32 %v22, %v35
  %v46 = vmul.f32 %v23, %v35
  %v47 = vmul.f32 %v24, %v35
  %v48 = vmul.f32 %v25, %v35
  %v49 = vmul.f32 %v26, %v35
  %v50 = vmul.f32 %v27, %v35
  %v51 = vmul.f32 %v28, %v35
  %v52 = vmul.f32 %v29, %v35
  %v53 = vld [vmem:[%s2] sm:$0x1]
  %v55 = vlaneseq
  %v56 = vshrl.u32 %v55, 7
  %v57 = vsub.s32 0, %v56
  %v58 = vrot.slane %v53, %v57
  %v60 = vadd.f32 %v37, %v58
  %v61 = vadd.f32 %v38, %v58
  %v62 = vadd.f32 %v39, %v58
  %v63 = vadd.f32 %v40, %v58
  %v64 = vadd.f32 %v41, %v58
  %v65 = vadd.f32 %v42, %v58
  %v66 = vadd.f32 %v43, %v58
  %v67 = vadd.f32 %v44, %v58
  %v68 = vadd.f32 %v45, %v58
  %v69 = vadd.f32 %v46, %v58
  %v70 = vadd.f32 %v47, %v58
  %v71 = vadd.f32 %v48, %v58
  %v72 = vadd.f32 %v49, %v58
  %v73 = vadd.f32 %v50, %v58
  %v74 = vadd.f32 %v51, %v58
  %v75 = vadd.f32 %v52, %v58
  %vm76 = vcmp.ge.f32.partialorder %v60, 0.0
  %vm77 = vcmp.ge.f32.partialorder %v61, 0.0
  %vm78 = vcmp.ge.f32.partialorder %v62, 0.0
  %vm79 = vcmp.ge.f32.partialorder %v63, 0.0
  %vm80 = vcmp.ge.f32.partialorder %v64, 0.0
  %vm81 = vcmp.ge.f32.partialorder %v65, 0.0
  %vm82 = vcmp.ge.f32.partialorder %v66, 0.0
  %vm83 = vcmp.ge.f32.partialorder %v67, 0.0
  %vm84 = vcmp.ge.f32.partialorder %v68, 0.0
  %vm85 = vcmp.ge.f32.partialorder %v69, 0.0
  %vm86 = vcmp.ge.f32.partialorder %v70, 0.0
  %vm87 = vcmp.ge.f32.partialorder %v71, 0.0
  %vm88 = vcmp.ge.f32.partialorder %v72, 0.0
  %vm89 = vcmp.ge.f32.partialorder %v73, 0.0
  %vm90 = vcmp.ge.f32.partialorder %v74, 0.0
  %vm91 = vcmp.ge.f32.partialorder %v75, 0.0
  %v92 = vmul.f32 %v60, 0.01
  %v93 = vmul.f32 %v61, 0.01
  %v94 = vmul.f32 %v62, 0.01
  %v95 = vmul.f32 %v63, 0.01
  %v96 = vmul.f32 %v64, 0.01
  %v97 = vmul.f32 %v65, 0.01
  %v98 = vmul.f32 %v66, 0.01
  %v99 = vmul.f32 %v67, 0.01
  %v100 = vmul.f32 %v68, 0.01
  %v101 = vmul.f32 %v69, 0.01
  %v102 = vmul.f32 %v70, 0.01
  %v103 = vmul.f32 %v71, 0.01
  %v104 = vmul.f32 %v72, 0.01
  %v105 = vmul.f32 %v73, 0.01
  %v106 = vmul.f32 %v74, 0.01
  %v107 = vmul.f32 %v75, 0.01
  %v108 = vsel %vm76, %v60, %v92
  %v109 = vsel %vm77, %v61, %v93
  %v110 = vsel %vm78, %v62, %v94
  %v111 = vsel %vm79, %v63, %v95
  %v112 = vsel %vm80, %v64, %v96
  %v113 = vsel %vm81, %v65, %v97
  %v114 = vsel %vm82, %v66, %v98
  %v115 = vsel %vm83, %v67, %v99
  %v116 = vsel %vm84, %v68, %v100
  %v117 = vsel %vm85, %v69, %v101
  %v118 = vsel %vm86, %v70, %v102
  %v119 = vsel %vm87, %v71, %v103
  %v120 = vsel %vm88, %v72, %v104
  %v121 = vsel %vm89, %v73, %v105
  %v122 = vsel %vm90, %v74, %v106
  %v123 = vsel %vm91, %v75, %v107
  %124 = vst [vmem:[%s3] sm:$0xff] %v108
  %125 = vst [vmem:[%s3 + $0x8] sm:$0xff] %v109
  %126 = vst [vmem:[%s3 + $0x10] sm:$0xff] %v110
  %127 = vst [vmem:[%s3 + $0x18] sm:$0xff] %v111
  %128 = vst [vmem:[%s3 + $0x20] sm:$0xff] %v112
  %129 = vst [vmem:[%s3 + $0x28] sm:$0xff] %v113
  %130 = vst [vmem:[%s3 + $0x30] sm:$0xff] %v114
  %131 = vst [vmem:[%s3 + $0x38] sm:$0xff] %v115
  %132 = vst [vmem:[%s3 + $0x40] sm:$0xff] %v116
  %133 = vst [vmem:[%s3 + $0x48] sm:$0xff] %v117
  %134 = vst [vmem:[%s3 + $0x50] sm:$0xff] %v118
  %135 = vst [vmem:[%s3 + $0x58] sm:$0xff] %v119
  %136 = vst [vmem:[%s3 + $0x60] sm:$0xff] %v120
  %137 = vst [vmem:[%s3 + $0x68] sm:$0xff] %v121
  %138 = vst [vmem:[%s3 + $0x70] sm:$0xff] %v122
  %139 = vst [vmem:[%s3 + $0x78] sm:$0xff] %v123
  // Predicated region
  $region14: #{res_block_forward.19} parent=0 // pred_check
    _
  $region15: #{res_block_forward.19} parent=0 // pred_check_branch
    %141 = sbr.rel (0) target = $region17
  $region16: #{res_block_forward.19} parent=0 // pred_region
    _
  $region17: #{res_block_forward.19} parent=0 // pred_fallthru
    _
  // Predicated region
  $region18: #{res_block_forward.19} parent=0 // pred_check
    _
  $region19: #{res_block_forward.19} parent=0 // pred_check_branch
    %143 = sbr.rel (0) target = $region21
  $region20: #{res_block_forward.19} parent=0 // pred_region
    _
  $region21: #{res_block_forward.19} parent=0 // pred_fallthru
    _

// kernel: res_block_forward.18
$region0: #{res_block_forward.18}
  #allocation0 [shape = 'u32[]', space=smem, size = 0x4, offset = 0x4, fixed_abs, tag = 'smem constant byte address 0x4 - core index']
  #allocation1 [shape = 'u32[144,128]{1,0:T(1,128)}', space=vmem, size = 0x12000, scoped, tag = 'internal scratch']
  %s0 = inlined_call_operand.vmem [shape: f32[128,128], index: 0, kind: input, shape index: {}]
  %s1 = inlined_call_operand.vmem [shape: f32[128,128], index: 1, kind: input, shape index: {}]
  %s2 = inlined_call_operand.vmem [shape: f32[128,128], index: 2, kind: output, shape index: {0}]
  %s3 = inlined_call_operand.vmem [shape: f32[8,128], index: 3, kind: output, shape index: {1}]
  %s4 = inlined_call_operand.vmem [shape: f32[8,128], index: 4, kind: output, shape index: {2}]
  %5 = xla_tuple %s2, %s3, %s4
  %s6 = sld [smem:[#allocation0]]
  $region38: #{res_block_forward.18} parent=0
    _
  %s8 = ssub.s32 1, %s6
  %s9 = scalar_select 0, %s8, %s6
  // Predicated region
  $region2: #{res_block_forward.18} parent=0 // pred_check
    _
  $region3: #{res_block_forward.18} parent=0 // pred_check_branch
    %11 = sbr.rel (0) target = $region5
  $region4: #{res_block_forward.18} parent=0 // pred_region
    _
  $region5: #{res_block_forward.18} parent=0 // pred_fallthru
    _
  // Predicated region
  $region6: #{res_block_forward.18} parent=0 // pred_check
    _
  $region7: #{res_block_forward.18} parent=0 // pred_check_branch
    %13 = sbr.rel (0) target = $region9
  $region8: #{res_block_forward.18} parent=0 // pred_region
    _
  $region9: #{res_block_forward.18} parent=0 // pred_fallthru
    _
  %p14 = scmp.eq.s32.totalorder 0, 0
  // Predicated region
  $region10: #{res_block_forward.18} parent=0 // pred_check
    %p15 = pneg %p14
  $region11: #{res_block_forward.18} parent=0 // pred_check_branch
    %17 = sbr.rel (%p15) target = $region13
  $region12: #{res_block_forward.18} parent=0 // pred_region
    %18 = vst [vmem:[%s3] sm:$0xff] 0.0
    %19 = vst [vmem:[%s4] sm:$0xff] 0.0
  $region13: #{res_block_forward.18} parent=0 // pred_fallthru
    _
  %v20 = vld [vmem:[%s0] sm:$0xff]
  %v21 = vld [vmem:[%s0 + $0x8] sm:$0xff]
  %v22 = vld [vmem:[%s0 + $0x10] sm:$0xff]
  %v23 = vld [vmem:[%s0 + $0x18] sm:$0xff]
  %v24 = vld [vmem:[%s0 + $0x20] sm:$0xff]
  %v25 = vld [vmem:[%s0 + $0x28] sm:$0xff]
  %v26 = vld [vmem:[%s0 + $0x30] sm:$0xff]
  %v27 = vld [vmem:[%s0 + $0x38] sm:$0xff]
  %v28 = vld [vmem:[%s0 + $0x40] sm:$0xff]
  %v29 = vld [vmem:[%s0 + $0x48] sm:$0xff]
  %v30 = vld [vmem:[%s0 + $0x50] sm:$0xff]
  %v31 = vld [vmem:[%s0 + $0x58] sm:$0xff]
  %v32 = vld [vmem:[%s0 + $0x60] sm:$0xff]
  %v33 = vld [vmem:[%s0 + $0x68] sm:$0xff]
  %v34 = vld [vmem:[%s0 + $0x70] sm:$0xff]
  %v35 = vld [vmem:[%s0 + $0x78] sm:$0xff]
  %v36 = vld [vmem:[%s1] sm:$0xff]
  %v37 = vld [vmem:[%s1 + $0x8] sm:$0xff]
  %v38 = vld [vmem:[%s1 + $0x10] sm:$0xff]
  %v39 = vld [vmem:[%s1 + $0x18] sm:$0xff]
  %v40 = vld [vmem:[%s1 + $0x20] sm:$0xff]
  %v41 = vld [vmem:[%s1 + $0x28] sm:$0xff]
  %v42 = vld [vmem:[%s1 + $0x30] sm:$0xff]
  %v43 = vld [vmem:[%s1 + $0x38] sm:$0xff]
  %v44 = vld [vmem:[%s1 + $0x40] sm:$0xff]
  %v45 = vld [vmem:[%s1 + $0x48] sm:$0xff]
  %v46 = vld [vmem:[%s1 + $0x50] sm:$0xff]
  %v47 = vld [vmem:[%s1 + $0x58] sm:$0xff]
  %v48 = vld [vmem:[%s1 + $0x60] sm:$0xff]
  %v49 = vld [vmem:[%s1 + $0x68] sm:$0xff]
  %v50 = vld [vmem:[%s1 + $0x70] sm:$0xff]
  %v51 = vld [vmem:[%s1 + $0x78] sm:$0xff]
  %52 = vmatprep.subr.mxu0 0.0
  %53 = vmatpush1.msra.mxu0 %v36
  %54 = vmatprep.subr.mxu0 0.0
  %55 = vmatpush1.msra.mxu0 %v37
  %56 = vmatprep.subr.mxu0 0.0
  %57 = vmatpush1.msra.mxu0 %v38
  %58 = vmatprep.subr.mxu0 0.0
  %59 = vmatpush1.msra.mxu0 %v39
  %60 = vmatprep.subr.mxu0 0.0
  %61 = vmatpush1.msra.mxu0 %v40
  %62 = vmatprep.subr.mxu0 0.0
  %63 = vmatpush1.msra.mxu0 %v41
  %64 = vmatprep.subr.mxu0 0.0
  %65 = vmatpush1.msra.mxu0 %v42
  %66 = vmatprep.subr.mxu0 0.0
  %67 = vmatpush1.msra.mxu0 %v43
  %68 = vmatprep.subr.mxu0 0.0
  %69 = vmatpush1.msra.mxu0 %v44
  %70 = vmatprep.subr.mxu0 0.0
  %71 = vmatpush1.msra.mxu0 %v45
  %72 = vmatprep.subr.mxu0 0.0
  %73 = vmatpush1.msra.mxu0 %v46
  %74 = vmatprep.subr.mxu0 0.0
  %75 = vmatpush1.msra.mxu0 %v47
  %76 = vmatprep.subr.mxu0 0.0
  %77 = vmatpush1.msra.mxu0 %v48
  %78 = vmatprep.subr.mxu0 0.0
  %79 = vmatpush1.msra.mxu0 %v49
  %80 = vmatprep.subr.mxu0 0.0
  %81 = vmatpush1.msra.mxu0 %v50
  %82 = vmatprep.subr.mxu0 0.0
  %83 = vmatpush1.msra.mxu0 %v51
  %84 = vmatprep.subr.mxu0 0.0
  %85 = vmatpush1.msra.mxu0 0.0
  %86 = vmatprep.subr.mxu0 0.0
  %87 = vmatpush1.msra.mxu0 0.0
  %88 = vmatprep.subr.mxu0 0.0
  %89 = vmatpush1.msra.mxu0 0.0
  %90 = vmatprep.subr.mxu0 0.0
  %91 = vmatpush1.msra.mxu0 0.0
  %92 = vmatprep.subr.mxu0 0.0
  %93 = vmatpush1.msra.mxu0 0.0
  %94 = vmatprep.subr.mxu0 0.0
  %95 = vmatpush1.msra.mxu0 0.0
  %96 = vmatprep.subr.mxu0 0.0
  %97 = vmatpush1.msra.mxu0 0.0
  %98 = vmatprep.subr.mxu0 0.0
  %99 = vmatpush1.msra.mxu0 0.0
  %100 = vmatprep.subr.mxu0 0.0
  %101 = vmatpush1.msra.mxu0 0.0
  %102 = vmatprep.subr.mxu0 0.0
  %103 = vmatpush1.msra.mxu0 0.0
  %104 = vmatprep.subr.mxu0 0.0
  %105 = vmatpush1.msra.mxu0 0.0
  %106 = vmatprep.subr.mxu0 0.0
  %107 = vmatpush1.msra.mxu0 0.0
  %108 = vmatprep.subr.mxu0 0.0
  %109 = vmatpush1.msra.mxu0 0.0
  %110 = vmatprep.subr.mxu0 0.0
  %111 = vmatpush1.msra.mxu0 0.0
  %112 = vmatprep.subr.mxu0 0.0
  %113 = vmatpush1.msra.mxu0 0.0
  %114 = vmatprep.subr.mxu0 0.0
  %115 = vmatpush1.msra.mxu0 0.0
  %116 = vmatprep.mubr.f32.mxu0 0.0
  %117 = vmatmul.mubr.f32.gmra.mrb[0].mxu0 %v20
  %v118 = vpop.f32.mrb[0].mxu0
  %v119 = vadd.f32 0.0, %v118
  %v120 = vpop.f32.mrb[0].mxu0
  %121 = vmatprep.mubr.f32.mxu0 0.0
  %122 = vmatmul.mubr.f32.gmra.mrb[0].mxu0 %v21
  %v123 = vpop.f32.mrb[0].mxu0
  %v124 = vadd.f32 0.0, %v123
  %v125 = vpop.f32.mrb[0].mxu0
  %126 = vmatprep.mubr.f32.mxu0 0.0
  %127 = vmatmul.mubr.f32.gmra.mrb[0].mxu0 %v22
  %v128 = vpop.f32.mrb[0].mxu0
  %v129 = vadd.f32 0.0, %v128
  %v130 = vpop.f32.mrb[0].mxu0
  %131 = vmatprep.mubr.f32.mxu0 0.0
  %132 = vmatmul.mubr.f32.gmra.mrb[0].mxu0 %v23
  %v133 = vpop.f32.mrb[0].mxu0
  %v134 = vadd.f32 0.0, %v133
  %v135 = vpop.f32.mrb[0].mxu0
  %136 = vmatprep.mubr.f32.mxu0 0.0
  %137 = vmatmul.mubr.f32.gmra.mrb[0].mxu0 %v24
  %v138 = vpop.f32.mrb[0].mxu0
  %v139 = vadd.f32 0.0, %v138
  %v140 = vpop.f32.mrb[0].mxu0
  %141 = vmatprep.mubr.f32.mxu0 0.0
  %142 = vmatmul.mubr.f32.gmra.mrb[0].mxu0 %v25
  %v143 = vpop.f32.mrb[0].mxu0
  %v144 = vadd.f32 0.0, %v143
  %v145 = vpop.f32.mrb[0].mxu0
  %146 = vmatprep.mubr.f32.mxu0 0.0
  %147 = vmatmul.mubr.f32.gmra.mrb[0].mxu0 %v26
  %v148 = vpop.f32.mrb[0].mxu0
  %v149 = vadd.f32 0.0, %v148
  %v150 = vpop.f32.mrb[0].mxu0
  %151 = vmatprep.mubr.f32.mxu0 0.0
  %152 = vmatmul.mubr.f32.gmra.mrb[0].mxu0 %v27
  %v153 = vpop.f32.mrb[0].mxu0
  %v154 = vadd.f32 0.0, %v153
  %v155 = vpop.f32.mrb[0].mxu0
  %156 = vmatprep.mubr.f32.mxu0 0.0
  %157 = vmatmul.mubr.f32.gmra.mrb[0].mxu0 %v28
  %v158 = vpop.f32.mrb[0].mxu0
  %v159 = vadd.f32 0.0, %v158
  %v160 = vpop.f32.mrb[0].mxu0
  %161 = vmatprep.mubr.f32.mxu0 0.0
  %162 = vmatmul.mubr.f32.gmra.mrb[0].mxu0 %v29
  %v163 = vpop.f32.mrb[0].mxu0
  %v164 = vadd.f32 0.0, %v163
  %v165 = vpop.f32.mrb[0].mxu0
  %166 = vmatprep.mubr.f32.mxu0 0.0
  %167 = vmatmul.mubr.f32.gmra.mrb[0].mxu0 %v30
  %v168 = vpop.f32.mrb[0].mxu0
  %v169 = vadd.f32 0.0, %v168
  %v170 = vpop.f32.mrb[0].mxu0
  %171 = vmatprep.mubr.f32.mxu0 0.0
  %172 = vmatmul.mubr.f32.gmra.mrb[0].mxu0 %v31
  %v173 = vpop.f32.mrb[0].mxu0
  %v174 = vadd.f32 0.0, %v173
  %v175 = vpop.f32.mrb[0].mxu0
  %176 = vmatprep.mubr.f32.mxu0 0.0
  %177 = vmatmul.mubr.f32.gmra.mrb[0].mxu0 %v32
  %v178 = vpop.f32.mrb[0].mxu0
  %v179 = vadd.f32 0.0, %v178
  %v180 = vpop.f32.mrb[0].mxu0
  %181 = vmatprep.mubr.f32.mxu0 0.0
  %182 = vmatmul.mubr.f32.gmra.mrb[0].mxu0 %v33
  %v183 = vpop.f32.mrb[0].mxu0
  %v184 = vadd.f32 0.0, %v183
  %v185 = vpop.f32.mrb[0].mxu0
  %186 = vmatprep.mubr.f32.mxu0 0.0
  %187 = vmatmul.mubr.f32.gmra.mrb[0].mxu0 %v34
  %v188 = vpop.f32.mrb[0].mxu0
  %v189 = vadd.f32 0.0, %v188
  %v190 = vpop.f32.mrb[0].mxu0
  %191 = vmatprep.mubr.f32.mxu0 0.0
  %192 = vmatmul.mubr.f32.gmra.mrb[0].mxu0 %v35
  %v193 = vpop.f32.mrb[0].mxu0
  %v194 = vadd.f32 0.0, %v193
  %v195 = vpop.f32.mrb[0].mxu0
  %196 = vdwg.mxu0
  %197 = vst [vmem:[%s2] sm:$0xff] %v119
  %198 = vst [vmem:[%s2 + $0x8] sm:$0xff] %v124
  %199 = vst [vmem:[%s2 + $0x10] sm:$0xff] %v129
  %200 = vst [vmem:[%s2 + $0x18] sm:$0xff] %v134
  %201 = vst [vmem:[%s2 + $0x20] sm:$0xff] %v139
  %202 = vst [vmem:[%s2 + $0x28] sm:$0xff] %v144
  %203 = vst [vmem:[%s2 + $0x30] sm:$0xff] %v149
  %204 = vst [vmem:[%s2 + $0x38] sm:$0xff] %v154
  %205 = vst [vmem:[%s2 + $0x40] sm:$0xff] %v159
  %206 = vst [vmem:[%s2 + $0x48] sm:$0xff] %v164
  %207 = vst [vmem:[%s2 + $0x50] sm:$0xff] %v169
  %208 = vst [vmem:[%s2 + $0x58] sm:$0xff] %v174
  %209 = vst [vmem:[%s2 + $0x60] sm:$0xff] %v179
  %210 = vst [vmem:[%s2 + $0x68] sm:$0xff] %v184
  %211 = vst [vmem:[%s2 + $0x70] sm:$0xff] %v189
  %212 = vst [vmem:[%s2 + $0x78] sm:$0xff] %v194
  %v213 = vld [vmem:[%s3] sm:$0xff]
  %v214 = vadd.f32 %v119, %v124
  %v215 = vadd.f32 %v214, %v129
  %v216 = vadd.f32 %v215, %v134
  %v217 = vadd.f32 %v216, %v139
  %v218 = vadd.f32 %v217, %v144
  %v219 = vadd.f32 %v218, %v149
  %v220 = vadd.f32 %v219, %v154
  %v221 = vadd.f32 %v220, %v159
  %v222 = vadd.f32 %v221, %v164
  %v223 = vadd.f32 %v222, %v169
  %v224 = vadd.f32 %v223, %v174
  %v225 = vadd.f32 %v224, %v179
  %v226 = vadd.f32 %v225, %v184
  %v227 = vadd.f32 %v226, %v189
  %v228 = vadd.f32 %v227, %v194
  %v229 = vadd.f32 %v213, %v228
  %230 = vst [vmem:[%s3] sm:$0xff] %v229
  %v231 = vld [vmem:[%s4] sm:$0xff]
  %v232 = vmul.f32 %v119, %v119
  %v233 = vmul.f32 %v124, %v124
  %v234 = vmul.f32 %v129, %v129
  %v235 = vmul.f32 %v134, %v134
  %v236 = vmul.f32 %v139, %v139
  %v237 = vmul.f32 %v144, %v144
  %v238 = vmul.f32 %v149, %v149
  %v239 = vmul.f32 %v154, %v154
  %v240 = vmul.f32 %v159, %v159
  %v241 = vmul.f32 %v164, %v164
  %v242 = vmul.f32 %v169, %v169
  %v243 = vmul.f32 %v174, %v174
  %v244 = vmul.f32 %v179, %v179
  %v245 = vmul.f32 %v184, %v184
  %v246 = vmul.f32 %v189, %v189
  %v247 = vmul.f32 %v194, %v194
  %v248 = vadd.f32 %v232, %v233
  %v249 = vadd.f32 %v248, %v234
  %v250 = vadd.f32 %v249, %v235
  %v251 = vadd.f32 %v250, %v236
  %v252 = vadd.f32 %v251, %v237
  %v253 = vadd.f32 %v252, %v238
  %v254 = vadd.f32 %v253, %v239
  %v255 = vadd.f32 %v254, %v240
  %v256 = vadd.f32 %v255, %v241
  %v257 = vadd.f32 %v256, %v242
  %v258 = vadd.f32 %v257, %v243
  %v259 = vadd.f32 %v258, %v244
  %v260 = vadd.f32 %v259, %v245
  %v261 = vadd.f32 %v260, %v246
  %v262 = vadd.f32 %v261, %v247
  %v263 = vadd.f32 %v231, %v262
  %264 = vst [vmem:[%s4] sm:$0xff] %v263
  // Predicated region
  $region14: #{res_block_forward.18} parent=0 // pred_check
    _
  $region15: #{res_block_forward.18} parent=0 // pred_check_branch
    %266 = sbr.rel (0) target = $region17
  $region16: #{res_block_forward.18} parent=0 // pred_region
    _
  $region17: #{res_block_forward.18} parent=0 // pred_fallthru
    _
  // Predicated region
  $region18: #{res_block_forward.18} parent=0 // pred_check
    _
  $region19: #{res_block_forward.18} parent=0 // pred_check_branch
    %268 = sbr.rel (0) target = $region21
  $region20: #{res_block_forward.18} parent=0 // pred_region
    _
  $region21: #{res_block_forward.18} parent=0 // pred_fallthru
    _
  // Predicated region
  $region22: #{res_block_forward.18} parent=0 // pred_check
    _
  $region23: #{res_block_forward.18} parent=0 // pred_check_branch
    %270 = sbr.rel (0) target = $region25
  $region24: #{res_block_forward.18} parent=0 // pred_region
    _
  $region25: #{res_block_forward.18} parent=0 // pred_fallthru
    _
  // Predicated region
  $region26: #{res_block_forward.18} parent=0 // pred_check
    _
  $region27: #{res_block_forward.18} parent=0 // pred_check_branch
    %272 = sbr.rel (0) target = $region29
  $region28: #{res_block_forward.18} parent=0 // pred_region
    _
  $region29: #{res_block_forward.18} parent=0 // pred_fallthru
    _
  // Predicated region
  $region30: #{res_block_forward.18} parent=0 // pred_check
    _
  $region31: #{res_block_forward.18} parent=0 // pred_check_branch
    %274 = sbr.rel (0) target = $region33
  $region32: #{res_block_forward.18} parent=0 // pred_region
    _
  $region33: #{res_block_forward.18} parent=0 // pred_fallthru
    _
  // Predicated region
  $region34: #{res_block_forward.18} parent=0 // pred_check
    _
  $region35: #{res_block_forward.18} parent=0 // pred_check_branch
    %276 = sbr.rel (0) target = $region37
  $region36: #{res_block_forward.18} parent=0 // pred_region
    _
  $region37: #{res_block_forward.18} parent=0 // pred_fallthru
    _

</llo_original>
